<compile_context>
chip_gen: v6e
topology: v6e:2x2x1
jax: 0.10.0
libtpu: 0.0.40
codegen_flags: <defaults>
</compile_context>

<pallas_src>
import functools

import jax
import jax.numpy as jnp
from jax.experimental import pallas as pl
from jax.experimental.pallas import tpu as pltpu


def _round_up(a, m):
    return (a + m - 1) // m * m


def ffn_kernel(x_hbm, w1_ref, b1_ref, w2_ref, b2_ref, g_ref, be_ref, o_ref,
               xbuf, hbuf, sem, *, t_len, t_tile, ext, t_hid_r, sub, d_in, eps):
    """One (batch, time-tile) block per grid step.

    x_hbm    : [B, P, d_in_p]     time+channel padded input, resident in HBM
    w1_ref   : [k0, d_in_p, d_hid_p]   conv1 taps (transposed for x @ W)
    b1_ref   : [1, d_hid_p]
    w2_ref   : [k1, d_hid_p, d_in_p]
    b2_ref   : [1, d_in_p]
    g_ref/be_ref : [1, d_in_p]         LayerNorm affine (zero on padded chans)
    o_ref    : [1, t_tile, d_in_p]
    xbuf     : VMEM (2, ext, d_in_p)   manual double buffer of the halo window
    hbuf     : VMEM (t_hid_r, d_hid_p) staged ReLU'd hidden activation
    sem      : DMA semaphores (2,)
    """
    b = pl.program_id(0)
    i = pl.program_id(1)
    n_t = pl.num_programs(1)
    k0 = w1_ref.shape[0]
    k1 = w2_ref.shape[0]
    pad0 = (k0 - 1) // 2
    pad1 = (k1 - 1) // 2
    halo = pad0 + pad1
    d_in_p = o_ref.shape[-1]

    # ---- manual 2-slot double buffer of the haloed input window ------------
    def fetch(ti, slot_):
        t0 = pl.multiple_of(ti * t_tile, sub)
        pltpu.make_async_copy(x_hbm.at[b, pl.ds(t0, ext), :],
                              xbuf.at[slot_], sem.at[slot_]).start()

    slot = jax.lax.rem(i, 2)

    @pl.when(i == 0)
    def _():
        fetch(i, slot)                       # prime this batch row

    @pl.when(i + 1 < n_t)
    def _():
        fetch(i + 1, 1 - slot)               # prefetch next tile's window

    pltpu.make_async_copy(x_hbm.at[b, pl.ds(0, ext), :],
                          xbuf.at[slot], sem.at[slot]).wait()
    xw = xbuf.at[slot]                       # (ext, d_in_p) VMEM view

    # ---- conv1 (d_in -> d_hid): k0 shifted MXU matmuls, f32 accumulation ---
    acc1 = jnp.dot(xw[0:t_hid_r, :], w1_ref[0],
                   preferred_element_type=jnp.float32)
    for k in range(1, k0):                   # k0 small & static (unrolled)
        acc1 = acc1 + jnp.dot(xw[k:k + t_hid_r, :], w1_ref[k],
                              preferred_element_type=jnp.float32)
    h = jnp.maximum(acc1 + b1_ref[...].astype(jnp.float32), 0.0)
    hbuf[...] = h.astype(hbuf.dtype)         # stage once in VMEM scratch

    # PyTorch zero-pads the *hidden* activation before conv2.  Only boundary
    # tiles can own hidden rows outside [0, T), so only they pay the mask.
    lo = i * t_tile - pad1
    @pl.when(jnp.logical_or(lo < 0, lo + t_hid_r > t_len))
    def _():
        row = jax.lax.broadcasted_iota(jnp.int32, (t_hid_r, 1), 0) + lo
        keep = jnp.logical_and(row >= 0, row < t_len)
        hbuf[...] = jnp.where(keep, hbuf[...], 0).astype(hbuf.dtype)

    # ---- conv2 (d_hid -> d_in): k1 shifted MXU matmuls, f32 accumulation ---
    acc2 = jnp.dot(hbuf[0:t_tile, :], w2_ref[0],
                   preferred_element_type=jnp.float32)
    for k in range(1, k1):
        acc2 = acc2 + jnp.dot(hbuf[k:k + t_tile, :], w2_ref[k],
                              preferred_element_type=jnp.float32)
    y = acc2 + b2_ref[...].astype(jnp.float32)          # (t_tile, d_in_p)

    # TODO(synk): dropout omitted (module evaluated in eval mode -> identity).

    # ---- residual (slice of the already-resident window) + LayerNorm -------
    res = xw[halo:halo + t_tile, :].astype(jnp.float32)
    z = y + res                                        # padded channels == 0
    mean = jnp.sum(z, axis=-1, keepdims=True) * (1.0 / d_in)
    zc = z - mean
    if d_in_p != d_in:                       # static: mask padded channels
        col = jax.lax.broadcasted_iota(jnp.int32, (1, d_in_p), 1)
        zc = jnp.where(col < d_in, zc, 0.0)
    var = jnp.sum(zc * zc, axis=-1, keepdims=True) * (1.0 / d_in)
    zn = zc * jax.lax.rsqrt(var + eps)
    out = zn * g_ref[...].astype(jnp.float32) + be_ref[...].astype(jnp.float32)
    o_ref[0] = out.astype(o_ref.dtype)


@functools.partial(jax.jit,
                   static_argnames=("kernel_size", "t_tile", "compute_dtype", "eps"))
def positionwise_ffn(x, w1, b1, w2, b2, gamma, beta, *,
                     kernel_size, t_tile=256, compute_dtype=None, eps=1e-5):
    """x: [B, T, d_in]; w1: [d_hid, d_in, k0]; w2: [d_in, d_hid, k1] (PyTorch Conv1d layout)."""
    B, T, d_in = x.shape
    d_hid = w1.shape[0]
    k0, k1 = kernel_size
    assert k0 % 2 == 1 and k1 % 2 == 1, (
        "even kernel sizes break the residual add in the reference module")
    pad0 = (k0 - 1) // 2
    pad1 = (k1 - 1) // 2
    halo = pad0 + pad1

    if compute_dtype is None:
        # bf16 MXU operands for f32 inputs (f32 accumulation stays in-kernel).
        compute_dtype = jnp.bfloat16 if x.dtype == jnp.float32 else x.dtype
    cdt = jnp.dtype(compute_dtype)
    sub = max(8, 32 // cdt.itemsize)         # sublane rows: 8 f32 / 16 bf16

    # Lane-dense channel padding (MXU K/N dims and the output last dim).
    d_in_p = _round_up(d_in, 128)
    d_hid_p = _round_up(d_hid, 128)

    # Time tiling (dtype-aware sublane alignment).
    t_tile = max(sub, min(_round_up(t_tile, sub), _round_up(T, sub)))
    n_t = -(-T // t_tile)
    t_out = n_t * t_tile
    t_hid_r = _round_up(t_tile + k1 - 1, sub)     # hidden rows staged per tile
    ext = _round_up(t_hid_r + k0 - 1, sub)        # haloed input window rows
    p_len = (n_t - 1) * t_tile + ext              # padded time length
    right = p_len - halo - T

    # One fused pad+cast pass over the activation (time halos + channel pad);
    # the channel pad is needed for lane density anyway, so this is the single
    # extra HBM pass the op pays outside the kernel.
    x_pad = jnp.pad(x, ((0, 0), (halo, right), (0, d_in_p - d_in))).astype(cdt)
    w1_t = jnp.pad(jnp.transpose(w1, (2, 1, 0)),
                   ((0, 0), (0, d_in_p - d_in), (0, d_hid_p - d_hid))).astype(cdt)
    w2_t = jnp.pad(jnp.transpose(w2, (2, 1, 0)),
                   ((0, 0), (0, d_hid_p - d_hid), (0, d_in_p - d_in))).astype(cdt)
    b1_2d = jnp.pad(b1, (0, d_hid_p - d_hid)).reshape(1, d_hid_p).astype(jnp.float32)
    b2_2d = jnp.pad(b2, (0, d_in_p - d_in)).reshape(1, d_in_p).astype(jnp.float32)
    g_2d = jnp.pad(gamma, (0, d_in_p - d_in)).reshape(1, d_in_p).astype(jnp.float32)
    be_2d = jnp.pad(beta, (0, d_in_p - d_in)).reshape(1, d_in_p).astype(jnp.float32)

    kernel = functools.partial(
        ffn_kernel, t_len=T, t_tile=t_tile, ext=ext, t_hid_r=t_hid_r,
        sub=sub, d_in=d_in, eps=eps)

    # Explicit VMEM budget: x window (2 slots), single-buffered weights,
    # double-buffered output tile, hidden scratch, f32 temporaries + headroom.
    csz = cdt.itemsize
    osz = jnp.dtype(x.dtype).itemsize
    vmem_needed = (
        2 * ext * d_in_p * csz
        + (k0 * d_in_p * d_hid_p + k1 * d_hid_p * d_in_p) * csz
        + 2 * (d_hid_p + 3 * d_in_p) * 4
        + 2 * t_tile * d_in_p * osz
        + t_hid_r * d_hid_p * csz
        + (t_hid_r * d_hid_p + 2 * t_tile * d_in_p) * 4)
    vmem_limit = int(min(max(int(vmem_needed * 1.5) + (2 << 20), 32 << 20),
                         127 << 20))

    flops = 2 * B * t_out * (k0 * d_in_p * d_hid_p + k1 * d_hid_p * d_in_p)
    bytes_accessed = (x_pad.size * csz
                      + B * t_out * d_in_p * osz
                      + (w1_t.size + w2_t.size) * csz
                      + (b1_2d.size + b2_2d.size + g_2d.size + be_2d.size) * 4)
    cost = pl.CostEstimate(flops=flops, transcendentals=B * t_out,
                           bytes_accessed=bytes_accessed)

    grid_spec = pltpu.PrefetchScalarGridSpec(
        num_scalar_prefetch=0,
        grid=(B, n_t),
        in_specs=[
            # Activation stays in HBM; the kernel DMAs per-tile halo windows.
            pl.BlockSpec(memory_space=pl.ANY),
            # Constant-index blocks: single-buffered, fetched once, resident.
            pl.BlockSpec((k0, d_in_p, d_hid_p), lambda b, i: (0, 0, 0),
                         pipeline_mode=pl.Buffered(1)),
            pl.BlockSpec((1, d_hid_p), lambda b, i: (0, 0),
                         pipeline_mode=pl.Buffered(1)),
            pl.BlockSpec((k1, d_hid_p, d_in_p), lambda b, i: (0, 0, 0),
                         pipeline_mode=pl.Buffered(1)),
            pl.BlockSpec((1, d_in_p), lambda b, i: (0, 0),
                         pipeline_mode=pl.Buffered(1)),
            pl.BlockSpec((1, d_in_p), lambda b, i: (0, 0),
                         pipeline_mode=pl.Buffered(1)),
            pl.BlockSpec((1, d_in_p), lambda b, i: (0, 0),
                         pipeline_mode=pl.Buffered(1)),
        ],
        out_specs=pl.BlockSpec((1, t_tile, d_in_p), lambda b, i: (b, i, 0)),
        scratch_shapes=[
            pltpu.VMEM((2, ext, d_in_p), cdt),       # halo-window double buffer
            pltpu.VMEM((t_hid_r, d_hid_p), cdt),     # staged hidden activation
            pltpu.SemaphoreType.DMA((2,)),
        ],
    )

    out = pl.pallas_call(
        kernel,
        out_shape=jax.ShapeDtypeStruct((B, t_out, d_in_p), x.dtype),
        grid_spec=grid_spec,
        compiler_params=pltpu.CompilerParams(
            # Batch axis across the two TensorCores; time axis sequential per
            # core (required by the cross-step window prefetch, and avoids
            # both cores holding/fetching the same activation rows).
            dimension_semantics=("parallel", "arbitrary"),
            vmem_limit_bytes=vmem_limit),
        cost_estimate=cost,
    )(x_pad, w1_t, b1_2d, w2_t, b2_2d, g_2d, be_2d)
    return out[:, :T, :d_in]


def ref_forward(x, w1, b1, w2, b2, gamma, beta, eps=1e-5):
    """Pure-JAX reference mirroring the PyTorch forward (dropout = identity)."""
    k0, k1 = w1.shape[2], w2.shape[2]
    xc = jnp.transpose(x, (0, 2, 1))                       # NCW
    h = jax.lax.conv_general_dilated(
        xc, w1, (1,), [((k0 - 1) // 2, (k0 - 1) // 2)],
        dimension_numbers=("NCH", "OIH", "NCH")) + b1[None, :, None]
    h = jnp.maximum(h, 0.0)
    y = jax.lax.conv_general_dilated(
        h, w2, (1,), [((k1 - 1) // 2, (k1 - 1) // 2)],
        dimension_numbers=("NCH", "OIH", "NCH")) + b2[None, :, None]
    y = jnp.transpose(y, (0, 2, 1))
    z = y + x
    mean = jnp.mean(z, -1, keepdims=True)
    var = jnp.mean((z - mean) ** 2, -1, keepdims=True)
    return (z - mean) / jnp.sqrt(var + eps) * gamma + beta


if __name__ == "__main__":
    B, T, d_in, d_hid = 2, 48, 32, 64
    kernel_size = (3, 3)

    key = jax.random.PRNGKey(0)
    kx, k1w, k1b, k2w, k2b = jax.random.split(key, 5)

    x = jax.random.normal(kx, (B, T, d_in), jnp.float32)
    # Conv1d params in PyTorch layout: weight [out, in, K], bias [out].
    w1 = jax.random.normal(k1w, (d_hid, d_in, kernel_size[0]), jnp.float32) * 0.05
    b1 = jax.random.normal(k1b, (d_hid,), jnp.float32) * 0.05
    w2 = jax.random.normal(k2w, (d_in, d_hid, kernel_size[1]), jnp.float32) * 0.05
    b2 = jax.random.normal(k2b, (d_in,), jnp.float32) * 0.05
    gamma = jnp.ones((d_in,), jnp.float32)
    beta = jnp.zeros((d_in,), jnp.float32)

    ref = jax.block_until_ready(ref_forward(x, w1, b1, w2, b2, gamma, beta))

    # 1) f32-compute path (bit-accurate check of halo / mask / LayerNorm math).
    #    t_tile=16 forces the multi-tile manual-DMA halo path at this small T.
    out32 = positionwise_ffn(x, w1, b1, w2, b2, gamma, beta,
                             kernel_size=kernel_size, t_tile=16,
                             compute_dtype=jnp.float32)
    out32 = jax.block_until_ready(out32)
    assert out32.shape == (B, T, d_in)
    err32 = jnp.max(jnp.abs(out32 - ref))
    assert jnp.allclose(out32, ref, atol=1e-4, rtol=1e-4), f"f32 max abs err = {err32}"

    # 2) default path: bf16 MXU operands with f32 accumulation (perf path).
    out_bf = positionwise_ffn(x, w1, b1, w2, b2, gamma, beta,
                              kernel_size=kernel_size, t_tile=16)
    out_bf = jax.block_until_ready(out_bf)
    assert out_bf.shape == (B, T, d_in)
    err_bf = jnp.max(jnp.abs(out_bf - ref))
    assert jnp.allclose(out_bf, ref, atol=5e-2, rtol=5e-2), f"bf16 max abs err = {err_bf}"

    print("KERNEL_OK")
</pallas_src>

<mosaic_0001>
module attributes {stable_mosaic.version = 11 : i64} {
  func.func @ffn_kernel(%arg0: i32, %arg1: i32, %arg2: memref<2x64x128xf32, #tpu.memory_space<any>>, %arg3: memref<3x128x128xf32, #tpu.memory_space<vmem>>, %arg4: memref<1x128xf32, #tpu.memory_space<vmem>>, %arg5: memref<3x128x128xf32, #tpu.memory_space<vmem>>, %arg6: memref<1x128xf32, #tpu.memory_space<vmem>>, %arg7: memref<1x128xf32, #tpu.memory_space<vmem>>, %arg8: memref<1x128xf32, #tpu.memory_space<vmem>>, %arg9: memref<1x16x128xf32, #tpu.memory_space<vmem>>, %arg10: memref<2x32x128xf32, #tpu.memory_space<vmem>>, %arg11: memref<24x128xf32, #tpu.memory_space<vmem>>, %arg12: memref<2x!tpu.dma_semaphore, #tpu.memory_space<semaphore_mem>>) attributes {dimension_semantics = [#tpu.dimension_semantics<parallel>, #tpu.dimension_semantics<arbitrary>], iteration_bounds = array<i64: 2, 3>, scalar_prefetch = 0 : i64, scratch_operands = 3 : i64, tpu.core_type = #tpu.core_type<tc>, window_params = [{}, {pipeline_mode = #tpu.pipeline_mode<synchronous>, transform_indices = @transform_1, window_bounds = array<i64: 3, 128, 128>}, {pipeline_mode = #tpu.pipeline_mode<synchronous>, transform_indices = @transform_2, window_bounds = array<i64: 1, 128>}, {pipeline_mode = #tpu.pipeline_mode<synchronous>, transform_indices = @transform_3, window_bounds = array<i64: 3, 128, 128>}, {pipeline_mode = #tpu.pipeline_mode<synchronous>, transform_indices = @transform_4, window_bounds = array<i64: 1, 128>}, {pipeline_mode = #tpu.pipeline_mode<synchronous>, transform_indices = @transform_5, window_bounds = array<i64: 1, 128>}, {pipeline_mode = #tpu.pipeline_mode<synchronous>, transform_indices = @transform_6, window_bounds = array<i64: 1, 128>}, {transform_indices = @transform_7, window_bounds = array<i64: 1, 16, 128>}]} {
    %c2_i32 = arith.constant 2 : i32
    %0 = arith.remsi %arg1, %c2_i32 : i32
    %c0_i32 = arith.constant 0 : i32
    %1 = arith.cmpi eq, %arg1, %c0_i32 : i32
    %2 = arith.extui %1 : i1 to i32
    %c0_i32_0 = arith.constant 0 : i32
    %3 = arith.cmpi ne, %2, %c0_i32_0 : i32
    scf.if %3 {
      %c16_i32_71 = arith.constant 16 : i32
      %101 = arith.muli %arg1, %c16_i32_71 : i32
      %102 = tpu.assume_multiple %101, 8 : i32
      %c0_i32_72 = arith.constant 0 : i32
      %103 = tpu.memref_slice %arg2[%arg0, %102, %c0_i32_72] : memref<2x64x128xf32, #tpu.memory_space<any>> -> memref<1x32x128xf32, #tpu.memory_space<any>>
      %104 = tpu.memref_squeeze %103 : memref<1x32x128xf32, #tpu.memory_space<any>> -> memref<32x128xf32, #tpu.memory_space<any>>
      %c0_i32_73 = arith.constant 0 : i32
      %c0_i32_74 = arith.constant 0 : i32
      %105 = tpu.memref_slice %arg10[%0, %c0_i32_73, %c0_i32_74] : memref<2x32x128xf32, #tpu.memory_space<vmem>> -> memref<1x32x128xf32, #tpu.memory_space<vmem>>
      %106 = tpu.memref_squeeze %105 : memref<1x32x128xf32, #tpu.memory_space<vmem>> -> memref<32x128xf32, #tpu.memory_space<vmem>>
      %107 = tpu.memref_slice %arg12[%0] : memref<2x!tpu.dma_semaphore, #tpu.memory_space<semaphore_mem>> -> memref<1x!tpu.dma_semaphore, #tpu.memory_space<semaphore_mem>>
      %108 = tpu.memref_squeeze %107 : memref<1x!tpu.dma_semaphore, #tpu.memory_space<semaphore_mem>> -> memref<!tpu.dma_semaphore, #tpu.memory_space<semaphore_mem>>
      tpu.enqueue_dma source(%104 : memref<32x128xf32, #tpu.memory_space<any>>) target(%106 : memref<32x128xf32, #tpu.memory_space<vmem>>) target_semaphore(%108 : memref<!tpu.dma_semaphore, #tpu.memory_space<semaphore_mem>>)
    } else {
    }
    %c1_i32 = arith.constant 1 : i32
    %4 = arith.addi %arg1, %c1_i32 : i32
    %c3_i32 = arith.constant 3 : i32
    %5 = arith.cmpi slt, %4, %c3_i32 : i32
    %6 = arith.extui %5 : i1 to i32
    %c0_i32_1 = arith.constant 0 : i32
    %7 = arith.cmpi ne, %6, %c0_i32_1 : i32
    scf.if %7 {
      %c1_i32_71 = arith.constant 1 : i32
      %101 = arith.addi %arg1, %c1_i32_71 : i32
      %c1_i32_72 = arith.constant 1 : i32
      %102 = arith.subi %c1_i32_72, %0 : i32
      %c16_i32_73 = arith.constant 16 : i32
      %103 = arith.muli %101, %c16_i32_73 : i32
      %104 = tpu.assume_multiple %103, 8 : i32
      %c0_i32_74 = arith.constant 0 : i32
      %105 = tpu.memref_slice %arg2[%arg0, %104, %c0_i32_74] : memref<2x64x128xf32, #tpu.memory_space<any>> -> memref<1x32x128xf32, #tpu.memory_space<any>>
      %106 = tpu.memref_squeeze %105 : memref<1x32x128xf32, #tpu.memory_space<any>> -> memref<32x128xf32, #tpu.memory_space<any>>
      %c0_i32_75 = arith.constant 0 : i32
      %c0_i32_76 = arith.constant 0 : i32
      %107 = tpu.memref_slice %arg10[%102, %c0_i32_75, %c0_i32_76] : memref<2x32x128xf32, #tpu.memory_space<vmem>> -> memref<1x32x128xf32, #tpu.memory_space<vmem>>
      %108 = tpu.memref_squeeze %107 : memref<1x32x128xf32, #tpu.memory_space<vmem>> -> memref<32x128xf32, #tpu.memory_space<vmem>>
      %109 = tpu.memref_slice %arg12[%102] : memref<2x!tpu.dma_semaphore, #tpu.memory_space<semaphore_mem>> -> memref<1x!tpu.dma_semaphore, #tpu.memory_space<semaphore_mem>>
      %110 = tpu.memref_squeeze %109 : memref<1x!tpu.dma_semaphore, #tpu.memory_space<semaphore_mem>> -> memref<!tpu.dma_semaphore, #tpu.memory_space<semaphore_mem>>
      tpu.enqueue_dma source(%106 : memref<32x128xf32, #tpu.memory_space<any>>) target(%108 : memref<32x128xf32, #tpu.memory_space<vmem>>) target_semaphore(%110 : memref<!tpu.dma_semaphore, #tpu.memory_space<semaphore_mem>>)
    } else {
    }
    %c0_i32_2 = arith.constant 0 : i32
    %c0_i32_3 = arith.constant 0 : i32
    %8 = tpu.memref_slice %arg2[%arg0, %c0_i32_2, %c0_i32_3] : memref<2x64x128xf32, #tpu.memory_space<any>> -> memref<1x32x128xf32, #tpu.memory_space<any>>
    %9 = tpu.memref_squeeze %8 : memref<1x32x128xf32, #tpu.memory_space<any>> -> memref<32x128xf32, #tpu.memory_space<any>>
    %c0_i32_4 = arith.constant 0 : i32
    %c0_i32_5 = arith.constant 0 : i32
    %10 = tpu.memref_slice %arg10[%0, %c0_i32_4, %c0_i32_5] : memref<2x32x128xf32, #tpu.memory_space<vmem>> -> memref<1x32x128xf32, #tpu.memory_space<vmem>>
    %11 = tpu.memref_squeeze %10 : memref<1x32x128xf32, #tpu.memory_space<vmem>> -> memref<32x128xf32, #tpu.memory_space<vmem>>
    %12 = tpu.memref_slice %arg12[%0] : memref<2x!tpu.dma_semaphore, #tpu.memory_space<semaphore_mem>> -> memref<1x!tpu.dma_semaphore, #tpu.memory_space<semaphore_mem>>
    %13 = tpu.memref_squeeze %12 : memref<1x!tpu.dma_semaphore, #tpu.memory_space<semaphore_mem>> -> memref<!tpu.dma_semaphore, #tpu.memory_space<semaphore_mem>>
    tpu.wait_dma2 semaphore(%13 : memref<!tpu.dma_semaphore, #tpu.memory_space<semaphore_mem>>) src(%9 : memref<32x128xf32, #tpu.memory_space<any>>) dst(%11 : memref<32x128xf32, #tpu.memory_space<vmem>>)
    %c0_i32_6 = arith.constant 0 : i32
    %c0_i32_7 = arith.constant 0 : i32
    %14 = tpu.memref_slice %arg10[%0, %c0_i32_6, %c0_i32_7] : memref<2x32x128xf32, #tpu.memory_space<vmem>> -> memref<1x32x128xf32, #tpu.memory_space<vmem>>
    %15 = tpu.memref_squeeze %14 : memref<1x32x128xf32, #tpu.memory_space<vmem>> -> memref<32x128xf32, #tpu.memory_space<vmem>>
    %c0 = arith.constant 0 : index
    %c0_8 = arith.constant 0 : index
    %16 = vector.load %15[%c0, %c0_8] : memref<32x128xf32, #tpu.memory_space<vmem>>, vector<24x128xf32>
    %c0_9 = arith.constant 0 : index
    %c0_10 = arith.constant 0 : index
    %c0_11 = arith.constant 0 : index
    %17 = vector.load %arg3[%c0_9, %c0_10, %c0_11] : memref<3x128x128xf32, #tpu.memory_space<vmem>>, vector<1x128x128xf32>
    %18 = vector.shape_cast %17 : vector<1x128x128xf32> to vector<128x128xf32>
    %cst = arith.constant dense<0.000000e+00> : vector<24x128xf32>
    %19 = tpu.matmul %16, %18, %cst {dimension_numbers = #tpu.dot_dimension_numbers<[1], [0], [0], [1], [0, 0, 1, 1], [], []>} : vector<24x128xf32>, vector<128x128xf32>, vector<24x128xf32> -> vector<24x128xf32>
    %c0_i32_12 = arith.constant 0 : i32
    %c0_i32_13 = arith.constant 0 : i32
    %20 = tpu.memref_slice %arg10[%0, %c0_i32_12, %c0_i32_13] : memref<2x32x128xf32, #tpu.memory_space<vmem>> -> memref<1x32x128xf32, #tpu.memory_space<vmem>>
    %21 = tpu.memref_squeeze %20 : memref<1x32x128xf32, #tpu.memory_space<vmem>> -> memref<32x128xf32, #tpu.memory_space<vmem>>
    %c1 = arith.constant 1 : index
    %c0_14 = arith.constant 0 : index
    %22 = vector.load %21[%c1, %c0_14] : memref<32x128xf32, #tpu.memory_space<vmem>>, vector<24x128xf32>
    %c1_15 = arith.constant 1 : index
    %c0_16 = arith.constant 0 : index
    %c0_17 = arith.constant 0 : index
    %23 = vector.load %arg3[%c1_15, %c0_16, %c0_17] : memref<3x128x128xf32, #tpu.memory_space<vmem>>, vector<1x128x128xf32>
    %24 = vector.shape_cast %23 : vector<1x128x128xf32> to vector<128x128xf32>
    %cst_18 = arith.constant dense<0.000000e+00> : vector<24x128xf32>
    %25 = tpu.matmul %22, %24, %cst_18 {dimension_numbers = #tpu.dot_dimension_numbers<[1], [0], [0], [1], [0, 0, 1, 1], [], []>} : vector<24x128xf32>, vector<128x128xf32>, vector<24x128xf32> -> vector<24x128xf32>
    %26 = arith.addf %19, %25 : vector<24x128xf32>
    %c0_i32_19 = arith.constant 0 : i32
    %c0_i32_20 = arith.constant 0 : i32
    %27 = tpu.memref_slice %arg10[%0, %c0_i32_19, %c0_i32_20] : memref<2x32x128xf32, #tpu.memory_space<vmem>> -> memref<1x32x128xf32, #tpu.memory_space<vmem>>
    %28 = tpu.memref_squeeze %27 : memref<1x32x128xf32, #tpu.memory_space<vmem>> -> memref<32x128xf32, #tpu.memory_space<vmem>>
    %c2 = arith.constant 2 : index
    %c0_21 = arith.constant 0 : index
    %29 = vector.load %28[%c2, %c0_21] : memref<32x128xf32, #tpu.memory_space<vmem>>, vector<24x128xf32>
    %c2_22 = arith.constant 2 : index
    %c0_23 = arith.constant 0 : index
    %c0_24 = arith.constant 0 : index
    %30 = vector.load %arg3[%c2_22, %c0_23, %c0_24] : memref<3x128x128xf32, #tpu.memory_space<vmem>>, vector<1x128x128xf32>
    %31 = vector.shape_cast %30 : vector<1x128x128xf32> to vector<128x128xf32>
    %cst_25 = arith.constant dense<0.000000e+00> : vector<24x128xf32>
    %32 = tpu.matmul %29, %31, %cst_25 {dimension_numbers = #tpu.dot_dimension_numbers<[1], [0], [0], [1], [0, 0, 1, 1], [], []>} : vector<24x128xf32>, vector<128x128xf32>, vector<24x128xf32> -> vector<24x128xf32>
    %33 = arith.addf %26, %32 : vector<24x128xf32>
    %c0_26 = arith.constant 0 : index
    %c0_27 = arith.constant 0 : index
    %34 = vector.load %arg4[%c0_26, %c0_27] : memref<1x128xf32, #tpu.memory_space<vmem>>, vector<1x128xf32>
    %35 = vector.broadcast %34 : vector<1x128xf32> to vector<24x128xf32>
    %36 = arith.addf %33, %35 : vector<24x128xf32>
    %cst_28 = arith.constant 0.000000e+00 : f32
    %37 = vector.broadcast %cst_28 : f32 to vector<24x128xf32>
    %38 = arith.maximumf %36, %37 : vector<24x128xf32>
    %c0_29 = arith.constant 0 : index
    %c0_30 = arith.constant 0 : index
    %39 = vector.load %arg11[%c0_29, %c0_30] : memref<24x128xf32, #tpu.memory_space<vmem>>, vector<24x128xf32>
    tpu.vector_store %arg11[%c0_29, %c0_30], %38 {strides = array<i32>} : memref<24x128xf32, #tpu.memory_space<vmem>>, vector<24x128xf32>,
    %c16_i32 = arith.constant 16 : i32
    %40 = arith.muli %arg1, %c16_i32 : i32
    %c1_i32_31 = arith.constant 1 : i32
    %41 = arith.subi %40, %c1_i32_31 : i32
    %c0_i32_32 = arith.constant 0 : i32
    %42 = arith.cmpi slt, %41, %c0_i32_32 : i32
    %c24_i32 = arith.constant 24 : i32
    %43 = arith.addi %41, %c24_i32 : i32
    %c48_i32 = arith.constant 48 : i32
    %44 = arith.cmpi sgt, %43, %c48_i32 : i32
    %45 = arith.ori %42, %44 : i1
    %46 = arith.extui %45 : i1 to i32
    %c0_i32_33 = arith.constant 0 : i32
    %47 = arith.cmpi ne, %46, %c0_i32_33 : i32
    scf.if %47 {
      %101 = tpu.iota {dimensions = array<i32: 0>} : vector<24x1xi32>
      %102 = vector.broadcast %41 : i32 to vector<24x1xi32>
      %103 = arith.addi %101, %102 : vector<24x1xi32>
      %c0_i32_71 = arith.constant 0 : i32
      %104 = vector.broadcast %c0_i32_71 : i32 to vector<24x1xi32>
      %105 = arith.cmpi sge, %103, %104 : vector<24x1xi32>
      %c48_i32_72 = arith.constant 48 : i32
      %106 = vector.broadcast %c48_i32_72 : i32 to vector<24x1xi32>
      %107 = arith.cmpi slt, %103, %106 : vector<24x1xi32>
      %108 = arith.andi %105, %107 : vector<24x1xi1>
      %c0_73 = arith.constant 0 : index
      %c0_74 = arith.constant 0 : index
      %109 = vector.load %arg11[%c0_73, %c0_74] : memref<24x128xf32, #tpu.memory_space<vmem>>, vector<24x128xf32>
      %c0_i32_75 = arith.constant 0 : i32
      %110 = arith.sitofp %c0_i32_75 : i32 to f32
      %111 = vector.shape_cast %108 : vector<24x1xi1> to vector<24x1xi1>
      %112 = vector.broadcast %111 : vector<24x1xi1> to vector<24x128xi1>
      %113 = vector.broadcast %110 : f32 to vector<24x128xf32>
      %114 = arith.select %112, %109, %113 : vector<24x128xi1>, vector<24x128xf32>
      %c0_76 = arith.constant 0 : index
      %c0_77 = arith.constant 0 : index
      %115 = vector.load %arg11[%c0_76, %c0_77] : memref<24x128xf32, #tpu.memory_space<vmem>>, vector<24x128xf32>
      tpu.vector_store %arg11[%c0_76, %c0_77], %114 {strides = array<i32>} : memref<24x128xf32, #tpu.memory_space<vmem>>, vector<24x128xf32>,
    } else {
    }
    %c0_34 = arith.constant 0 : index
    %c0_35 = arith.constant 0 : index
    %48 = vector.load %arg11[%c0_34, %c0_35] : memref<24x128xf32, #tpu.memory_space<vmem>>, vector<16x128xf32>
    %c0_36 = arith.constant 0 : index
    %c0_37 = arith.constant 0 : index
    %c0_38 = arith.constant 0 : index
    %49 = vector.load %arg5[%c0_36, %c0_37, %c0_38] : memref<3x128x128xf32, #tpu.memory_space<vmem>>, vector<1x128x128xf32>
    %50 = vector.shape_cast %49 : vector<1x128x128xf32> to vector<128x128xf32>
    %cst_39 = arith.constant dense<0.000000e+00> : vector<16x128xf32>
    %51 = tpu.matmul %48, %50, %cst_39 {dimension_numbers = #tpu.dot_dimension_numbers<[1], [0], [0], [1], [0, 0, 1, 1], [], []>} : vector<16x128xf32>, vector<128x128xf32>, vector<16x128xf32> -> vector<16x128xf32>
    %c1_40 = arith.constant 1 : index
    %c0_41 = arith.constant 0 : index
    %52 = vector.load %arg11[%c1_40, %c0_41] : memref<24x128xf32, #tpu.memory_space<vmem>>, vector<16x128xf32>
    %c1_42 = arith.constant 1 : index
    %c0_43 = arith.constant 0 : index
    %c0_44 = arith.constant 0 : index
    %53 = vector.load %arg5[%c1_42, %c0_43, %c0_44] : memref<3x128x128xf32, #tpu.memory_space<vmem>>, vector<1x128x128xf32>
    %54 = vector.shape_cast %53 : vector<1x128x128xf32> to vector<128x128xf32>
    %cst_45 = arith.constant dense<0.000000e+00> : vector<16x128xf32>
    %55 = tpu.matmul %52, %54, %cst_45 {dimension_numbers = #tpu.dot_dimension_numbers<[1], [0], [0], [1], [0, 0, 1, 1], [], []>} : vector<16x128xf32>, vector<128x128xf32>, vector<16x128xf32> -> vector<16x128xf32>
    %56 = arith.addf %51, %55 : vector<16x128xf32>
    %c2_46 = arith.constant 2 : index
    %c0_47 = arith.constant 0 : index
    %57 = vector.load %arg11[%c2_46, %c0_47] : memref<24x128xf32, #tpu.memory_space<vmem>>, vector<16x128xf32>
    %c2_48 = arith.constant 2 : index
    %c0_49 = arith.constant 0 : index
    %c0_50 = arith.constant 0 : index
    %58 = vector.load %arg5[%c2_48, %c0_49, %c0_50] : memref<3x128x128xf32, #tpu.memory_space<vmem>>, vector<1x128x128xf32>
    %59 = vector.shape_cast %58 : vector<1x128x128xf32> to vector<128x128xf32>
    %cst_51 = arith.constant dense<0.000000e+00> : vector<16x128xf32>
    %60 = tpu.matmul %57, %59, %cst_51 {dimension_numbers = #tpu.dot_dimension_numbers<[1], [0], [0], [1], [0, 0, 1, 1], [], []>} : vector<16x128xf32>, vector<128x128xf32>, vector<16x128xf32> -> vector<16x128xf32>
    %61 = arith.addf %56, %60 : vector<16x128xf32>
    %c0_52 = arith.constant 0 : index
    %c0_53 = arith.constant 0 : index
    %62 = vector.load %arg6[%c0_52, %c0_53] : memref<1x128xf32, #tpu.memory_space<vmem>>, vector<1x128xf32>
    %63 = vector.broadcast %62 : vector<1x128xf32> to vector<16x128xf32>
    %64 = arith.addf %61, %63 : vector<16x128xf32>
    %c0_i32_54 = arith.constant 0 : i32
    %c0_i32_55 = arith.constant 0 : i32
    %65 = tpu.memref_slice %arg10[%0, %c0_i32_54, %c0_i32_55] : memref<2x32x128xf32, #tpu.memory_space<vmem>> -> memref<1x32x128xf32, #tpu.memory_space<vmem>>
    %66 = tpu.memref_squeeze %65 : memref<1x32x128xf32, #tpu.memory_space<vmem>> -> memref<32x128xf32, #tpu.memory_space<vmem>>
    %c2_56 = arith.constant 2 : index
    %c0_57 = arith.constant 0 : index
    %67 = vector.load %66[%c2_56, %c0_57] : memref<32x128xf32, #tpu.memory_space<vmem>>, vector<16x128xf32>
    %68 = arith.addf %64, %67 : vector<16x128xf32>
    %cst_58 = arith.constant dense<0.000000e+00> : vector<16xf32>
    %69 = vector.multi_reduction <add>, %68, %cst_58 [1] : vector<16x128xf32> to vector<16xf32>
    %70 = vector.shape_cast %69 : vector<16xf32> to vector<16x1xf32>
    %cst_59 = arith.constant 3.125000e-02 : f32
    %71 = vector.broadcast %cst_59 : f32 to vector<16x1xf32>
    %72 = arith.mulf %70, %71 : vector<16x1xf32>
    %73 = vector.broadcast %72 : vector<16x1xf32> to vector<16x128xf32>
    %74 = arith.subf %68, %73 : vector<16x128xf32>
    %75 = tpu.iota {dimensions = array<i32: 1>} : vector<1x128xi32>
    %c32_i32 = arith.constant 32 : i32
    %76 = vector.broadcast %c32_i32 : i32 to vector<1x128xi32>
    %77 = arith.cmpi slt, %75, %76 : vector<1x128xi32>
    %cst_60 = arith.constant 0.000000e+00 : f32
    %78 = vector.shape_cast %77 : vector<1x128xi1> to vector<1x128xi1>
    %79 = vector.broadcast %78 : vector<1x128xi1> to vector<16x128xi1>
    %80 = vector.broadcast %cst_60 : f32 to vector<16x128xf32>
    %81 = arith.select %79, %74, %80 : vector<16x128xi1>, vector<16x128xf32>
    %82 = arith.mulf %81, %81 : vector<16x128xf32>
    %cst_61 = arith.constant dense<0.000000e+00> : vector<16xf32>
    %83 = vector.multi_reduction <add>, %82, %cst_61 [1] : vector<16x128xf32> to vector<16xf32>
    %84 = vector.shape_cast %83 : vector<16xf32> to vector<16x1xf32>
    %cst_62 = arith.constant 3.125000e-02 : f32
    %85 = vector.broadcast %cst_62 : f32 to vector<16x1xf32>
    %86 = arith.mulf %84, %85 : vector<16x1xf32>
    %cst_63 = arith.constant 9.99999974E-6 : f32
    %87 = vector.broadcast %cst_63 : f32 to vector<16x1xf32>
    %88 = arith.addf %86, %87 : vector<16x1xf32>
    %89 = math.rsqrt %88 : vector<16x1xf32>
    %90 = vector.broadcast %89 : vector<16x1xf32> to vector<16x128xf32>
    %91 = arith.mulf %81, %90 : vector<16x128xf32>
    %c0_64 = arith.constant 0 : index
    %c0_65 = arith.constant 0 : index
    %92 = vector.load %arg7[%c0_64, %c0_65] : memref<1x128xf32, #tpu.memory_space<vmem>>, vector<1x128xf32>
    %93 = vector.broadcast %92 : vector<1x128xf32> to vector<16x128xf32>
    %94 = arith.mulf %91, %93 : vector<16x128xf32>
    %c0_66 = arith.constant 0 : index
    %c0_67 = arith.constant 0 : index
    %95 = vector.load %arg8[%c0_66, %c0_67] : memref<1x128xf32, #tpu.memory_space<vmem>>, vector<1x128xf32>
    %96 = vector.broadcast %95 : vector<1x128xf32> to vector<16x128xf32>
    %97 = arith.addf %94, %96 : vector<16x128xf32>
    %c0_68 = arith.constant 0 : index
    %c0_69 = arith.constant 0 : index
    %c0_70 = arith.constant 0 : index
    %98 = vector.load %arg9[%c0_68, %c0_69, %c0_70] : memref<1x16x128xf32, #tpu.memory_space<vmem>>, vector<1x16x128xf32>
    %99 = vector.shape_cast %98 : vector<1x16x128xf32> to vector<16x128xf32>
    %100 = vector.shape_cast %97 : vector<16x128xf32> to vector<1x16x128xf32>
    tpu.vector_store %arg9[%c0_68, %c0_69, %c0_70], %100 {strides = array<i32>} : memref<1x16x128xf32, #tpu.memory_space<vmem>>, vector<1x16x128xf32>,
    return
  }
  func.func @transform_1(%arg0: i32, %arg1: i32) -> (i32, i32, i32) {
    %c0_i32 = arith.constant 0 : i32
    %c0_i32_0 = arith.constant 0 : i32
    %c0_i32_1 = arith.constant 0 : i32
    %c0_i32_2 = arith.constant 0 : i32
    return %c0_i32, %c0_i32_0, %c0_i32_1 : i32, i32, i32
  }
  func.func @transform_2(%arg0: i32, %arg1: i32) -> (i32, i32) {
    %c0_i32 = arith.constant 0 : i32
    %c0_i32_0 = arith.constant 0 : i32
    %c0_i32_1 = arith.constant 0 : i32
    return %c0_i32, %c0_i32_0 : i32, i32
  }
  func.func @transform_3(%arg0: i32, %arg1: i32) -> (i32, i32, i32) {
    %c0_i32 = arith.constant 0 : i32
    %c0_i32_0 = arith.constant 0 : i32
    %c0_i32_1 = arith.constant 0 : i32
    %c0_i32_2 = arith.constant 0 : i32
    return %c0_i32, %c0_i32_0, %c0_i32_1 : i32, i32, i32
  }
  func.func @transform_4(%arg0: i32, %arg1: i32) -> (i32, i32) {
    %c0_i32 = arith.constant 0 : i32
    %c0_i32_0 = arith.constant 0 : i32
    %c0_i32_1 = arith.constant 0 : i32
    return %c0_i32, %c0_i32_0 : i32, i32
  }
  func.func @transform_5(%arg0: i32, %arg1: i32) -> (i32, i32) {
    %c0_i32 = arith.constant 0 : i32
    %c0_i32_0 = arith.constant 0 : i32
    %c0_i32_1 = arith.constant 0 : i32
    return %c0_i32, %c0_i32_0 : i32, i32
  }
  func.func @transform_6(%arg0: i32, %arg1: i32) -> (i32, i32) {
    %c0_i32 = arith.constant 0 : i32
    %c0_i32_0 = arith.constant 0 : i32
    %c0_i32_1 = arith.constant 0 : i32
    return %c0_i32, %c0_i32_0 : i32, i32
  }
  func.func @transform_7(%arg0: i32, %arg1: i32) -> (i32, i32, i32) {
    %c0_i32 = arith.constant 0 : i32
    %c0_i32_0 = arith.constant 0 : i32
    return %arg0, %arg1, %c0_i32 : i32, i32, i32
  }
}

</mosaic_0001>

<llo_original>
// kernel: positionwise_ffn.1
$region0: #{positionwise_ffn.1}
  #allocation0 [shape = 'u32[]', space=smem, size = 0x4, offset = 0x4, fixed_abs, tag = 'smem constant byte address 0x4 - core index']
  #allocation1 [shape = 'u32[144,128]{1,0:T(1,128)}', space=vmem, size = 0x12000, scoped, tag = 'internal scratch']
  #allocation2 [shape = 'f32[2,32,128]{2,1,0:T(8,128)}', space=vmem, size = 0x8000, scoped, tag = 'scratch operand']
  #allocation3 [shape = 'f32[24,128]{1,0:T(8,128)}', space=vmem, size = 0x3000, scoped, tag = 'scratch operand']
  #allocation4 [shape = 's32[2]{0}', space=sflag, size = 0x8, scoped, tag = 'scratch operand']
  #allocation5 [shape = 's32[]', space=sflag, size = 0x4, offset = 0, fixed_abs, tag = 'sflag constant byte address 0x0 - dummy sync flag']
  #allocation6 [shape = 's32[]', space=sflag, size = 0x4, offset = 0, fixed_abs, tag = 'sflag constant byte address 0x0 - dummy sync flag']
  %s0 = inlined_call_operand.vmem [shape: f32[2,64,128], index: 0, kind: input, shape index: {}]
  %s1 = inlined_call_operand.vmem [shape: f32[3,128,128], index: 1, kind: input, shape index: {}]
  %s2 = inlined_call_operand.vmem [shape: f32[1,128], index: 2, kind: input, shape index: {}]
  %s3 = inlined_call_operand.vmem [shape: f32[3,128,128], index: 3, kind: input, shape index: {}]
  %s4 = inlined_call_operand.vmem [shape: f32[1,128], index: 4, kind: input, shape index: {}]
  %s5 = inlined_call_operand.vmem [shape: f32[1,128], index: 5, kind: input, shape index: {}]
  %s6 = inlined_call_operand.vmem [shape: f32[1,128], index: 6, kind: input, shape index: {}]
  %s7 = inlined_call_operand.vmem [shape: f32[2,48,128], index: 7, kind: output, shape index: {}]
  %s8 = sld [smem:[#allocation0]]
  $region137: #{positionwise_ffn.1} parent=0
    _
  %s10 = ssub.s32 1, %s8
  %s11 = scalar_select 0, %s10, %s8
  loop: start=0, step=1, limit=8
  $region2: #{positionwise_ffn.1} parent=0 // loop_pre_header
    _
  $region3: #{positionwise_ffn.1} parent=0 // loop_header
    %s13 = sphi 0, %s17
    %p14 = scmp.ge.s32.totalorder %s13, 8
    %s20 = sphi 0, %s32
    %s21 = sphi 0, %s28
    %s22 = sphi 0, %s20
    %s23 = sphi 0, %s21
    %s24 = sphi 0, %s22
    %s25 = sphi 0, %s23
    %s33 = sphi 0, %s33
    %s35 = sphi 0, %s33
    %s36 = sphi 0, %s35
    %s50 = sphi 0, %s36
    %s54 = sphi 0, %s54
    %s56 = sphi 0, %s54
    %s57 = sphi 0, %s56
    %s71 = sphi 0, %s57
    %s75 = sphi 0, %s75
    %s77 = sphi 0, %s75
    %s78 = sphi 0, %s77
    %s92 = sphi 0, %s78
    %s96 = sphi 0, %s96
    %s98 = sphi 0, %s96
    %s99 = sphi 0, %s98
    %s113 = sphi 0, %s99
    %s117 = sphi 0, %s117
    %s119 = sphi 0, %s117
    %s120 = sphi 0, %s119
    %s134 = sphi 0, %s120
    %s138 = sphi 0, %s138
    %s140 = sphi 0, %s138
    %s141 = sphi 0, %s140
    %s155 = sphi 0, %s141
    %s163 = sphi 0, %s165
    %s166 = sphi 0, %s163
    %s167 = sphi 0, %s166
    %s183 = sphi 0, %s167
  $region4: #{positionwise_ffn.1} parent=0 // loop_header_branch
    %16 = sbr.rel (%p14) target = $region8
  $region5: #{positionwise_ffn.1} parent=0 // loop_body
    %s18 = ssub.s32 %s13, 1
    %s19 = ssub.s32 %s13, 2
    %s26 = sadd.s32 1, %s21
    %p27 = scmp.ge.s32.totalorder %s26, 3
    %s28 = scalar_select %p27, 0, %s26
    %s29 = sadd.s32 1, %s20
    %s30 = scalar_select %p27, %s29, %s20
    %p31 = scmp.ge.s32.totalorder %s30, 2
    %s32 = scalar_select %p31, 0, %s30
    %s34 = sadd.s32 %s33, 1
    %p37 = scmp.eq.s32.totalorder %s13, 5
    %p38 = scmp.ne.s32.totalorder %s33, %s35
    %p39 = scmp.eq.s32.totalorder %s13, 0
    %p40 = por %p38, %p39
    %p41 = scmp.ne.s32.totalorder %s33, %s35
    %p42 = scmp.eq.s32.totalorder %s18, 5
    %p43 = por %p41, %p42
    %p44 = scmp.ne.s32.totalorder %s35, %s36
    %p45 = scmp.eq.s32.totalorder %s18, 0
    %p46 = por %p44, %p45
    %p47 = scmp.ne.s32.totalorder %s35, %s36
    %p48 = scmp.eq.s32.totalorder %s19, 5
    %p49 = por %p47, %p48
    %p51 = scmp.ne.s32.totalorder %s36, %s50
    %p52 = scmp.eq.s32.totalorder %s19, 0
    %p53 = por %p51, %p52
    %s55 = sadd.s32 %s54, 1
    %p58 = scmp.eq.s32.totalorder %s13, 5
    %p59 = scmp.ne.s32.totalorder %s54, %s56
    %p60 = scmp.eq.s32.totalorder %s13, 0
    %p61 = por %p59, %p60
    %p62 = scmp.ne.s32.totalorder %s54, %s56
    %p63 = scmp.eq.s32.totalorder %s18, 5
    %p64 = por %p62, %p63
    %p65 = scmp.ne.s32.totalorder %s56, %s57
    %p66 = scmp.eq.s32.totalorder %s18, 0
    %p67 = por %p65, %p66
    %p68 = scmp.ne.s32.totalorder %s56, %s57
    %p69 = scmp.eq.s32.totalorder %s19, 5
    %p70 = por %p68, %p69
    %p72 = scmp.ne.s32.totalorder %s57, %s71
    %p73 = scmp.eq.s32.totalorder %s19, 0
    %p74 = por %p72, %p73
    %s76 = sadd.s32 %s75, 1
    %p79 = scmp.eq.s32.totalorder %s13, 5
    %p80 = scmp.ne.s32.totalorder %s75, %s77
    %p81 = scmp.eq.s32.totalorder %s13, 0
    %p82 = por %p80, %p81
    %p83 = scmp.ne.s32.totalorder %s75, %s77
    %p84 = scmp.eq.s32.totalorder %s18, 5
    %p85 = por %p83, %p84
    %p86 = scmp.ne.s32.totalorder %s77, %s78
    %p87 = scmp.eq.s32.totalorder %s18, 0
    %p88 = por %p86, %p87
    %p89 = scmp.ne.s32.totalorder %s77, %s78
    %p90 = scmp.eq.s32.totalorder %s19, 5
    %p91 = por %p89, %p90
    %p93 = scmp.ne.s32.totalorder %s78, %s92
    %p94 = scmp.eq.s32.totalorder %s19, 0
    %p95 = por %p93, %p94
    %s97 = sadd.s32 %s96, 1
    %p100 = scmp.eq.s32.totalorder %s13, 5
    %p101 = scmp.ne.s32.totalorder %s96, %s98
    %p102 = scmp.eq.s32.totalorder %s13, 0
    %p103 = por %p101, %p102
    %p104 = scmp.ne.s32.totalorder %s96, %s98
    %p105 = scmp.eq.s32.totalorder %s18, 5
    %p106 = por %p104, %p105
    %p107 = scmp.ne.s32.totalorder %s98, %s99
    %p108 = scmp.eq.s32.totalorder %s18, 0
    %p109 = por %p107, %p108
    %p110 = scmp.ne.s32.totalorder %s98, %s99
    %p111 = scmp.eq.s32.totalorder %s19, 5
    %p112 = por %p110, %p111
    %p114 = scmp.ne.s32.totalorder %s99, %s113
    %p115 = scmp.eq.s32.totalorder %s19, 0
    %p116 = por %p114, %p115
    %s118 = sadd.s32 %s117, 1
    %p121 = scmp.eq.s32.totalorder %s13, 5
    %p122 = scmp.ne.s32.totalorder %s117, %s119
    %p123 = scmp.eq.s32.totalorder %s13, 0
    %p124 = por %p122, %p123
    %p125 = scmp.ne.s32.totalorder %s117, %s119
    %p126 = scmp.eq.s32.totalorder %s18, 5
    %p127 = por %p125, %p126
    %p128 = scmp.ne.s32.totalorder %s119, %s120
    %p129 = scmp.eq.s32.totalorder %s18, 0
    %p130 = por %p128, %p129
    %p131 = scmp.ne.s32.totalorder %s119, %s120
    %p132 = scmp.eq.s32.totalorder %s19, 5
    %p133 = por %p131, %p132
    %p135 = scmp.ne.s32.totalorder %s120, %s134
    %p136 = scmp.eq.s32.totalorder %s19, 0
    %p137 = por %p135, %p136
    %s139 = sadd.s32 %s138, 1
    %p142 = scmp.eq.s32.totalorder %s13, 5
    %p143 = scmp.ne.s32.totalorder %s138, %s140
    %p144 = scmp.eq.s32.totalorder %s13, 0
    %p145 = por %p143, %p144
    %p146 = scmp.ne.s32.totalorder %s138, %s140
    %p147 = scmp.eq.s32.totalorder %s18, 5
    %p148 = por %p146, %p147
    %p149 = scmp.ne.s32.totalorder %s140, %s141
    %p150 = scmp.eq.s32.totalorder %s18, 0
    %p151 = por %p149, %p150
    %p152 = scmp.ne.s32.totalorder %s140, %s141
    %p153 = scmp.eq.s32.totalorder %s19, 5
    %p154 = por %p152, %p153
    %p156 = scmp.ne.s32.totalorder %s141, %s155
    %p157 = scmp.eq.s32.totalorder %s19, 0
    %p158 = por %p156, %p157
    %s159 = ssub.s32 %s20, %s32
    %s160 = ssub.s32 %s21, %s28
    %s161 = sor.u32 %s159, %s160
    %p162 = scmp.eq.s32.totalorder %s161, 0
    %s164 = sadd.s32 %s163, 1
    %s165 = scalar_select %p162, %s163, %s164
    %p168 = pneg %p162
    %p169 = scmp.eq.s32.totalorder %s13, 5
    %p170 = por %p168, %p169
    %p171 = scmp.ne.s32.totalorder %s163, %s166
    %p172 = scmp.eq.s32.totalorder %s13, 0
    %p173 = por %p171, %p172
    %p174 = scmp.ne.s32.totalorder %s163, %s166
    %p175 = scmp.eq.s32.totalorder %s18, 5
    %p176 = por %p174, %p175
    %p177 = scmp.ne.s32.totalorder %s166, %s167
    %p178 = scmp.eq.s32.totalorder %s18, 0
    %p179 = por %p177, %p178
    %p180 = scmp.ne.s32.totalorder %s166, %s167
    %p181 = scmp.eq.s32.totalorder %s19, 5
    %p182 = por %p180, %p181
    %p184 = scmp.ne.s32.totalorder %s167, %s183
    %p185 = scmp.eq.s32.totalorder %s19, 0
    %p186 = por %p184, %p185
    %p187 = scmp.le.s32.totalorder 1, %s13
    %p188 = scmp.lt.s32.totalorder %s13, 7
    %p189 = pnand %p187, %p188
    %p190 = pneg %p189
    // Predicated region
    $region9: #{positionwise_ffn.1} parent=5 // pred_check
      _
    $region10: #{positionwise_ffn.1} parent=5 // pred_check_branch
      %192 = sbr.rel (%p189) target = $region12
    $region11: #{positionwise_ffn.1} parent=5 // pred_region
      %s193 = ssub.s32 %s13, 1
      // Predicated region
      $region13: #{positionwise_ffn.1} parent=11 // pred_check
        %p194 = pneg %p46
      $region14: #{positionwise_ffn.1} parent=11 // pred_check_branch
        %196 = sbr.rel (%p194) target = $region16
      $region15: #{positionwise_ffn.1} parent=11 // pred_region
        _
      $region16: #{positionwise_ffn.1} parent=11 // pred_fallthru
        _
      // Predicated region
      $region17: #{positionwise_ffn.1} parent=11 // pred_check
        %p197 = pneg %p67
      $region18: #{positionwise_ffn.1} parent=11 // pred_check_branch
        %199 = sbr.rel (%p197) target = $region20
      $region19: #{positionwise_ffn.1} parent=11 // pred_region
        _
      $region20: #{positionwise_ffn.1} parent=11 // pred_fallthru
        _
      // Predicated region
      $region21: #{positionwise_ffn.1} parent=11 // pred_check
        %p200 = pneg %p88
      $region22: #{positionwise_ffn.1} parent=11 // pred_check_branch
        %202 = sbr.rel (%p200) target = $region24
      $region23: #{positionwise_ffn.1} parent=11 // pred_region
        _
      $region24: #{positionwise_ffn.1} parent=11 // pred_fallthru
        _
      // Predicated region
      $region25: #{positionwise_ffn.1} parent=11 // pred_check
        %p203 = pneg %p109
      $region26: #{positionwise_ffn.1} parent=11 // pred_check_branch
        %205 = sbr.rel (%p203) target = $region28
      $region27: #{positionwise_ffn.1} parent=11 // pred_region
        _
      $region28: #{positionwise_ffn.1} parent=11 // pred_fallthru
        _
      // Predicated region
      $region29: #{positionwise_ffn.1} parent=11 // pred_check
        %p206 = pneg %p130
      $region30: #{positionwise_ffn.1} parent=11 // pred_check_branch
        %208 = sbr.rel (%p206) target = $region32
      $region31: #{positionwise_ffn.1} parent=11 // pred_region
        _
      $region32: #{positionwise_ffn.1} parent=11 // pred_fallthru
        _
      // Predicated region
      $region33: #{positionwise_ffn.1} parent=11 // pred_check
        %p209 = pneg %p151
      $region34: #{positionwise_ffn.1} parent=11 // pred_check_branch
        %211 = sbr.rel (%p209) target = $region36
      $region35: #{positionwise_ffn.1} parent=11 // pred_region
        _
      $region36: #{positionwise_ffn.1} parent=11 // pred_fallthru
        _
    $region12: #{positionwise_ffn.1} parent=5 // pred_fallthru
      _
    %p212 = scmp.lt.s32.totalorder %s13, 6
    // Predicated region
    $region37: #{positionwise_ffn.1} parent=5 // pred_check
      %p213 = pneg %p212
    $region38: #{positionwise_ffn.1} parent=5 // pred_check_branch
      %215 = sbr.rel (%p213) target = $region40
    $region39: #{positionwise_ffn.1} parent=5 // pred_region
      _
    $region40: #{positionwise_ffn.1} parent=5 // pred_fallthru
      _
    %p216 = scmp.le.s32.totalorder 1, %s13
    %p217 = scmp.lt.s32.totalorder %s13, 7
    %p218 = pnand %p216, %p217
    %p219 = pneg %p218
    // Predicated region
    $region41: #{positionwise_ffn.1} parent=5 // pred_check
      _
    $region42: #{positionwise_ffn.1} parent=5 // pred_check_branch
      %221 = sbr.rel (%p218) target = $region44
    $region43: #{positionwise_ffn.1} parent=5 // pred_region
      %s222 = ssub.s32 %s13, 1
      %p223 = pneg %p46
      %p224 = pneg %p43
      %p225 = pneg %p67
      %p226 = pneg %p64
      %p227 = pneg %p88
      %p228 = pneg %p85
      %p229 = pneg %p109
      %p230 = pneg %p106
      %p231 = pneg %p130
      %p232 = pneg %p127
      %p233 = pneg %p151
      %p234 = pneg %p148
      %p235 = pneg %p179
      %p236 = pneg %p176
      %s237 = smul.u32 2, %s23
      %p238 = scmp.lt.s32.totalorder %s22, 1
      %s239 = scalar_select %p238, %s22, 1
      %p240 = scmp.lt.s32.totalorder %s237, 5
      %s241 = scalar_select %p240, %s237, 5
      %s242 = smul.addr %s239, 6
      %s243 = sadd.s32 %s241, %s242
      %s244 = smul.addr %s243, 8
      %s245 = scalar_lea.vmem %s7, %s244
      %s246 = smul.u32 2, %s23
      %p247 = scmp.lt.s32.totalorder %s22, 1
      %s248 = scalar_select %p247, %s22, 1
      %p249 = scmp.lt.s32.totalorder %s246, 5
      %s250 = scalar_select %p249, %s246, 5
      %s251 = smul.addr %s248, 6
      %s252 = sadd.s32 %s250, %s251
      %s253 = smul.addr %s252, 8
      %s254 = scalar_lea.vmem %s7, %s253
      %s255 = smul.u32 2, %s23
      %p256 = scmp.lt.s32.totalorder %s23, 0
      %s257 = ssub.s32 0, %s23
      %s258 = scalar_select %p256, %s257, %s23
      %s259 = sand.u32 %s258, 1
      %s260 = ssub.s32 0, %s259
      %s261 = scalar_select %p256, %s260, %s259
      %p262 = scmp.eq.s32.totalorder %s23, 0
      // Predicated region
      $region45: #{positionwise_ffn.1} parent=43 // pred_check
        %p263 = pneg %p262
      $region46: #{positionwise_ffn.1} parent=43 // pred_check_branch
        %265 = sbr.rel (%p263) target = $region48
      $region47: #{positionwise_ffn.1} parent=43 // pred_region
        %s266 = smul.u32 %s23, 16
        %s267 = smul.u32 %s22, 64
        %s268 = sadd.s32 %s266, %s267
        %s269 = scalar_lea.vmem %s0, %s268
        %s270 = smul.u32 %s261, 32
        %s271 = scalar_lea.vmem [#allocation2], %s270
        %s272 = scalar_lea.sflag [#allocation4], %s261
        %p274 = scmp.lt.u32.totalorder 32, 8
        %p275 = pneg %p274
        // Predicated region
        $region49: #{positionwise_ffn.1} parent=47 // pred_check
          _
        $region50: #{positionwise_ffn.1} parent=47 // pred_check_branch
          %277 = sbr.rel (%p274) target = $region52
        $region51: #{positionwise_ffn.1} parent=47 // pred_region
          %s293 = sand.u32 32, 7
          %p294 = scmp.eq.s32.totalorder %s293, 0
          // Predicated region
          $region64: #{positionwise_ffn.1} parent=51 // pred_check
            %p295 = pneg %p294
          $region65: #{positionwise_ffn.1} parent=51 // pred_check_branch
            %297 = sbr.rel (%p295) target = $region67
          $region66: #{positionwise_ffn.1} parent=51 // pred_region
            loop: start=0, step=1, limit=1
            $region68: #{positionwise_ffn.1} parent=66 // loop_pre_header
              _
            $region69: #{positionwise_ffn.1} parent=66 // loop_header
              %s299 = sphi 0, %s303
              %p300 = scmp.ge.s32.totalorder %s299, 1
              %s304 = sphi %s269, %s269
              %s305 = sphi %s271, %s271
            $region70: #{positionwise_ffn.1} parent=66 // loop_header_branch
              %302 = sbr.rel (%p300) target = $region74
            $region71: #{positionwise_ffn.1} parent=66 // loop_body
              %v306 = vld [vmem:[%s304] sm:$0xff]
              %307 = vst [vmem:[%s305] sm:$0xff] %v306
              %v308 = vld [vmem:[%s304 + $0x8] sm:$0xff]
              %309 = vst [vmem:[%s305 + $0x8] sm:$0xff] %v308
              %v310 = vld [vmem:[%s304 + $0x10] sm:$0xff]
              %311 = vst [vmem:[%s305 + $0x10] sm:$0xff] %v310
              %v312 = vld [vmem:[%s304 + $0x18] sm:$0xff]
              %313 = vst [vmem:[%s305 + $0x18] sm:$0xff] %v312
            $region72: #{positionwise_ffn.1} parent=66 // loop_footer
              %s303 = sadd.s32 1, %s299
            $region73: #{positionwise_ffn.1} parent=66 // loop_footer_branch
              %298 = sbr.rel target = $region69
            $region74: #{positionwise_ffn.1} parent=66 // loop_exit
              _
          $region67: #{positionwise_ffn.1} parent=51 // pred_fallthru
            _
          %p314 = pneg %p294
          // Predicated region
          $region75: #{positionwise_ffn.1} parent=51 // pred_check
            _
          $region76: #{positionwise_ffn.1} parent=51 // pred_check_branch
            %316 = sbr.rel (%p294) target = $region78
          $region77: #{positionwise_ffn.1} parent=51 // pred_region
            %s317 = sand.u32 32, 7
          $region78: #{positionwise_ffn.1} parent=51 // pred_fallthru
            _
        $region52: #{positionwise_ffn.1} parent=47 // pred_fallthru
          _
        // Predicated region
        $region53: #{positionwise_ffn.1} parent=47 // pred_check
          %p278 = pneg %p274
        $region54: #{positionwise_ffn.1} parent=47 // pred_check_branch
          %280 = sbr.rel (%p278) target = $region56
        $region55: #{positionwise_ffn.1} parent=47 // pred_region
          %s281 = sshll.u32 1, 32
          %s282 = ssub.s32 %s281, 1
          loop: start=0, step=1, limit=1
          $region57: #{positionwise_ffn.1} parent=55 // loop_pre_header
            _
          $region58: #{positionwise_ffn.1} parent=55 // loop_header
            %s284 = sphi 0, %s288
            %p285 = scmp.ge.s32.totalorder %s284, 1
            %s289 = sphi %s269, %s269
            %s290 = sphi %s271, %s271
          $region59: #{positionwise_ffn.1} parent=55 // loop_header_branch
            %287 = sbr.rel (%p285) target = $region63
          $region60: #{positionwise_ffn.1} parent=55 // loop_body
            %v291 = vld [vmem:[%s289] sm:%s282]
            %292 = vst [vmem:[%s290] sm:%s282] %v291
          $region61: #{positionwise_ffn.1} parent=55 // loop_footer
            %s288 = sadd.s32 1, %s284
          $region62: #{positionwise_ffn.1} parent=55 // loop_footer_branch
            %283 = sbr.rel target = $region58
          $region63: #{positionwise_ffn.1} parent=55 // loop_exit
            _
        $region56: #{positionwise_ffn.1} parent=47 // pred_fallthru
          _
        // Predicated region
        $region79: #{positionwise_ffn.1} parent=47 // pred_check
          _
        $region80: #{positionwise_ffn.1} parent=47 // pred_check_branch
          %320 = sbr.rel (0) target = $region82
        $region81: #{positionwise_ffn.1} parent=47 // pred_region
          %321 = vsyncadd %s272, 512
        $region82: #{positionwise_ffn.1} parent=47 // pred_fallthru
          _
      $region48: #{positionwise_ffn.1} parent=43 // pred_fallthru
        _
      %s322 = sadd.s32 %s23, 1
      %p323 = scmp.lt.s32.totalorder %s322, 3
      // Predicated region
      $region83: #{positionwise_ffn.1} parent=43 // pred_check
        %p324 = pneg %p323
      $region84: #{positionwise_ffn.1} parent=43 // pred_check_branch
        %326 = sbr.rel (%p324) target = $region86
      $region85: #{positionwise_ffn.1} parent=43 // pred_region
        %s327 = ssub.s32 1, %s261
        %s328 = smul.u32 %s322, 16
        %s329 = smul.u32 %s22, 64
        %s330 = sadd.s32 %s328, %s329
        %s331 = scalar_lea.vmem %s0, %s330
        %s332 = smul.u32 %s327, 32
        %s333 = scalar_lea.vmem [#allocation2], %s332
        %s334 = scalar_lea.sflag [#allocation4], %s327
        %p336 = scmp.lt.u32.totalorder 32, 8
        %p337 = pneg %p336
        // Predicated region
        $region87: #{positionwise_ffn.1} parent=85 // pred_check
          _
        $region88: #{positionwise_ffn.1} parent=85 // pred_check_branch
          %339 = sbr.rel (%p336) target = $region90
        $region89: #{positionwise_ffn.1} parent=85 // pred_region
          %s355 = sand.u32 32, 7
          %p356 = scmp.eq.s32.totalorder %s355, 0
          // Predicated region
          $region102: #{positionwise_ffn.1} parent=89 // pred_check
            %p357 = pneg %p356
          $region103: #{positionwise_ffn.1} parent=89 // pred_check_branch
            %359 = sbr.rel (%p357) target = $region105
          $region104: #{positionwise_ffn.1} parent=89 // pred_region
            loop: start=0, step=1, limit=1
            $region106: #{positionwise_ffn.1} parent=104 // loop_pre_header
              _
            $region107: #{positionwise_ffn.1} parent=104 // loop_header
              %s361 = sphi 0, %s365
              %p362 = scmp.ge.s32.totalorder %s361, 1
              %s366 = sphi %s331, %s331
              %s367 = sphi %s333, %s333
            $region108: #{positionwise_ffn.1} parent=104 // loop_header_branch
              %364 = sbr.rel (%p362) target = $region112
            $region109: #{positionwise_ffn.1} parent=104 // loop_body
              %v368 = vld [vmem:[%s366] sm:$0xff]
              %369 = vst [vmem:[%s367] sm:$0xff] %v368
              %v370 = vld [vmem:[%s366 + $0x8] sm:$0xff]
              %371 = vst [vmem:[%s367 + $0x8] sm:$0xff] %v370
              %v372 = vld [vmem:[%s366 + $0x10] sm:$0xff]
              %373 = vst [vmem:[%s367 + $0x10] sm:$0xff] %v372
              %v374 = vld [vmem:[%s366 + $0x18] sm:$0xff]
              %375 = vst [vmem:[%s367 + $0x18] sm:$0xff] %v374
            $region110: #{positionwise_ffn.1} parent=104 // loop_footer
              %s365 = sadd.s32 1, %s361
            $region111: #{positionwise_ffn.1} parent=104 // loop_footer_branch
              %360 = sbr.rel target = $region107
            $region112: #{positionwise_ffn.1} parent=104 // loop_exit
              _
          $region105: #{positionwise_ffn.1} parent=89 // pred_fallthru
            _
          %p376 = pneg %p356
          // Predicated region
          $region113: #{positionwise_ffn.1} parent=89 // pred_check
            _
          $region114: #{positionwise_ffn.1} parent=89 // pred_check_branch
            %378 = sbr.rel (%p356) target = $region116
          $region115: #{positionwise_ffn.1} parent=89 // pred_region
            %s379 = sand.u32 32, 7
          $region116: #{positionwise_ffn.1} parent=89 // pred_fallthru
            _
        $region90: #{positionwise_ffn.1} parent=85 // pred_fallthru
          _
        // Predicated region
        $region91: #{positionwise_ffn.1} parent=85 // pred_check
          %p340 = pneg %p336
        $region92: #{positionwise_ffn.1} parent=85 // pred_check_branch
          %342 = sbr.rel (%p340) target = $region94
        $region93: #{positionwise_ffn.1} parent=85 // pred_region
          %s343 = sshll.u32 1, 32
          %s344 = ssub.s32 %s343, 1
          loop: start=0, step=1, limit=1
          $region95: #{positionwise_ffn.1} parent=93 // loop_pre_header
            _
          $region96: #{positionwise_ffn.1} parent=93 // loop_header
            %s346 = sphi 0, %s350
            %p347 = scmp.ge.s32.totalorder %s346, 1
            %s351 = sphi %s331, %s331
            %s352 = sphi %s333, %s333
          $region97: #{positionwise_ffn.1} parent=93 // loop_header_branch
            %349 = sbr.rel (%p347) target = $region101
          $region98: #{positionwise_ffn.1} parent=93 // loop_body
            %v353 = vld [vmem:[%s351] sm:%s344]
            %354 = vst [vmem:[%s352] sm:%s344] %v353
          $region99: #{positionwise_ffn.1} parent=93 // loop_footer
            %s350 = sadd.s32 1, %s346
          $region100: #{positionwise_ffn.1} parent=93 // loop_footer_branch
            %345 = sbr.rel target = $region96
          $region101: #{positionwise_ffn.1} parent=93 // loop_exit
            _
        $region94: #{positionwise_ffn.1} parent=85 // pred_fallthru
          _
        // Predicated region
        $region117: #{positionwise_ffn.1} parent=85 // pred_check
          _
        $region118: #{positionwise_ffn.1} parent=85 // pred_check_branch
          %382 = sbr.rel (0) target = $region120
        $region119: #{positionwise_ffn.1} parent=85 // pred_region
          %383 = vsyncadd %s334, 512
        $region120: #{positionwise_ffn.1} parent=85 // pred_fallthru
          _
      $region86: #{positionwise_ffn.1} parent=43 // pred_fallthru
        _
      %s384 = smul.u32 %s261, 32
      %s385 = scalar_lea.vmem [#allocation2], %s384
      %s386 = scalar_lea.sflag [#allocation4], %s261
      %s387 = smul.u32 32, 1
      %s388 = sshll.u32 %s387, 4
      %389 = dma.done %s386, %s388
      %v390 = vld [vmem:[%s385] sm:$0xff]
      %v391 = vld [vmem:[%s385 + $0x8] sm:$0xff]
      %v392 = vld [vmem:[%s385 + $0x10] sm:$0xff]
      %v393 = vld [vmem:[%s1] sm:$0xff]
      %v394 = vld [vmem:[%s1 + $0x8] sm:$0xff]
      %v395 = vld [vmem:[%s1 + $0x10] sm:$0xff]
      %v396 = vld [vmem:[%s1 + $0x18] sm:$0xff]
      %v397 = vld [vmem:[%s1 + $0x20] sm:$0xff]
      %v398 = vld [vmem:[%s1 + $0x28] sm:$0xff]
      %v399 = vld [vmem:[%s1 + $0x30] sm:$0xff]
      %v400 = vld [vmem:[%s1 + $0x38] sm:$0xff]
      %v401 = vld [vmem:[%s1 + $0x40] sm:$0xff]
      %v402 = vld [vmem:[%s1 + $0x48] sm:$0xff]
      %v403 = vld [vmem:[%s1 + $0x50] sm:$0xff]
      %v404 = vld [vmem:[%s1 + $0x58] sm:$0xff]
      %v405 = vld [vmem:[%s1 + $0x60] sm:$0xff]
      %v406 = vld [vmem:[%s1 + $0x68] sm:$0xff]
      %v407 = vld [vmem:[%s1 + $0x70] sm:$0xff]
      %v408 = vld [vmem:[%s1 + $0x78] sm:$0xff]
      %v409 = vld [vmem:[%s385 + $0x1] sm:$0xff]
      %v410 = vld [vmem:[%s385 + $0x9] sm:$0xff]
      %v411 = vld [vmem:[%s385 + $0x11] sm:$0xff]
      %s412 = scalar_lea.vmem %s1, 128
      %v413 = vld [vmem:[%s412] sm:$0xff]
      %v414 = vld [vmem:[%s412 + $0x8] sm:$0xff]
      %v415 = vld [vmem:[%s412 + $0x10] sm:$0xff]
      %v416 = vld [vmem:[%s412 + $0x18] sm:$0xff]
      %v417 = vld [vmem:[%s412 + $0x20] sm:$0xff]
      %v418 = vld [vmem:[%s412 + $0x28] sm:$0xff]
      %v419 = vld [vmem:[%s412 + $0x30] sm:$0xff]
      %v420 = vld [vmem:[%s412 + $0x38] sm:$0xff]
      %v421 = vld [vmem:[%s412 + $0x40] sm:$0xff]
      %v422 = vld [vmem:[%s412 + $0x48] sm:$0xff]
      %v423 = vld [vmem:[%s412 + $0x50] sm:$0xff]
      %v424 = vld [vmem:[%s412 + $0x58] sm:$0xff]
      %v425 = vld [vmem:[%s412 + $0x60] sm:$0xff]
      %v426 = vld [vmem:[%s412 + $0x68] sm:$0xff]
      %v427 = vld [vmem:[%s412 + $0x70] sm:$0xff]
      %v428 = vld [vmem:[%s412 + $0x78] sm:$0xff]
      %429 = vmatprep.subr.mxu0 0.0
      %430 = vmatpush1.msra.mxu0 %v428
      %431 = vmatprep.subr.mxu0 0.0
      %432 = vmatpush1.msra.mxu0 %v427
      %433 = vmatprep.subr.mxu0 0.0
      %434 = vmatpush1.msra.mxu0 %v426
      %435 = vmatprep.subr.mxu0 0.0
      %436 = vmatpush1.msra.mxu0 %v425
      %437 = vmatprep.subr.mxu0 0.0
      %438 = vmatpush1.msra.mxu0 %v424
      %439 = vmatprep.subr.mxu0 0.0
      %440 = vmatpush1.msra.mxu0 %v423
      %441 = vmatprep.subr.mxu0 0.0
      %442 = vmatpush1.msra.mxu0 %v422
      %443 = vmatprep.subr.mxu0 0.0
      %444 = vmatpush1.msra.mxu0 %v421
      %445 = vmatprep.subr.mxu0 0.0
      %446 = vmatpush1.msra.mxu0 %v420
      %447 = vmatprep.subr.mxu0 0.0
      %448 = vmatpush1.msra.mxu0 %v419
      %449 = vmatprep.subr.mxu0 0.0
      %450 = vmatpush1.msra.mxu0 %v418
      %451 = vmatprep.subr.mxu0 0.0
      %452 = vmatpush1.msra.mxu0 %v417
      %453 = vmatprep.subr.mxu0 0.0
      %454 = vmatpush1.msra.mxu0 %v416
      %455 = vmatprep.subr.mxu0 0.0
      %456 = vmatpush1.msra.mxu0 %v415
      %457 = vmatprep.subr.mxu0 0.0
      %458 = vmatpush1.msra.mxu0 %v414
      %459 = vmatprep.subr.mxu0 0.0
      %460 = vmatpush1.msra.mxu0 %v413
      %461 = vmatprep.subr.mxu0 0.0
      %462 = vmatpush2.msra.mxu0 0.0
      %463 = vmatprep.subr.mxu0 0.0
      %464 = vmatpush2.msra.mxu0 0.0
      %465 = vmatprep.subr.mxu0 0.0
      %466 = vmatpush2.msra.mxu0 0.0
      %467 = vmatprep.subr.mxu0 0.0
      %468 = vmatpush2.msra.mxu0 0.0
      %469 = vmatprep.subr.mxu0 0.0
      %470 = vmatpush2.msra.mxu0 0.0
      %471 = vmatprep.subr.mxu0 0.0
      %472 = vmatpush2.msra.mxu0 0.0
      %473 = vmatprep.subr.mxu0 0.0
      %474 = vmatpush2.msra.mxu0 0.0
      %475 = vmatprep.subr.mxu0 0.0
      %476 = vmatpush2.msra.mxu0 0.0
      %477 = vmatprep.subr.mxu0 0.0
      %478 = vmatpush2.msra.mxu0 0.0
      %479 = vmatprep.subr.mxu0 0.0
      %480 = vmatpush2.msra.mxu0 0.0
      %481 = vmatprep.subr.mxu0 0.0
      %482 = vmatpush2.msra.mxu0 0.0
      %483 = vmatprep.subr.mxu0 0.0
      %484 = vmatpush2.msra.mxu0 0.0
      %485 = vmatprep.subr.mxu0 0.0
      %486 = vmatpush2.msra.mxu0 0.0
      %487 = vmatprep.subr.mxu0 0.0
      %488 = vmatpush2.msra.mxu0 0.0
      %489 = vmatprep.subr.mxu0 0.0
      %490 = vmatpush2.msra.mxu0 0.0
      %491 = vmatprep.subr.mxu0 0.0
      %492 = vmatpush2.msra.mxu0 0.0
      %493 = vmatprep.mubr.f32.mxu0 0.0
      %494 = vmatmul.mubr.f32.gmra.mxu0 %v409
      %v495 = vpop.f32.mrf.mxu0
      %v496 = vadd.f32 0.0, %v495
      %v497 = vpop.f32.mrf.mxu0
      %498 = vmatprep.mubr.f32.mxu0 0.0
      %499 = vmatmul.mubr.f32.gmra.mxu0 %v410
      %v500 = vpop.f32.mrf.mxu0
      %v501 = vadd.f32 0.0, %v500
      %v502 = vpop.f32.mrf.mxu0
      %503 = vmatprep.mubr.f32.mxu0 0.0
      %504 = vmatmul.mubr.f32.gmra.mxu0 %v411
      %v505 = vpop.f32.mrf.mxu0
      %v506 = vadd.f32 0.0, %v505
      %v507 = vpop.f32.mrf.mxu0
      %508 = vdwg.mxu0
      %509 = vmatprep.subr.mxu0 0.0
      %510 = vmatpush1.msra.mxu0 %v408
      %511 = vmatprep.subr.mxu0 0.0
      %512 = vmatpush1.msra.mxu0 %v407
      %513 = vmatprep.subr.mxu0 0.0
      %514 = vmatpush1.msra.mxu0 %v406
      %515 = vmatprep.subr.mxu0 0.0
      %516 = vmatpush1.msra.mxu0 %v405
      %517 = vmatprep.subr.mxu0 0.0
      %518 = vmatpush1.msra.mxu0 %v404
      %519 = vmatprep.subr.mxu0 0.0
      %520 = vmatpush1.msra.mxu0 %v403
      %521 = vmatprep.subr.mxu0 0.0
      %522 = vmatpush1.msra.mxu0 %v402
      %523 = vmatprep.subr.mxu0 0.0
      %524 = vmatpush1.msra.mxu0 %v401
      %525 = vmatprep.subr.mxu0 0.0
      %526 = vmatpush1.msra.mxu0 %v400
      %527 = vmatprep.subr.mxu0 0.0
      %528 = vmatpush1.msra.mxu0 %v399
      %529 = vmatprep.subr.mxu0 0.0
      %530 = vmatpush1.msra.mxu0 %v398
      %531 = vmatprep.subr.mxu0 0.0
      %532 = vmatpush1.msra.mxu0 %v397
      %533 = vmatprep.subr.mxu0 0.0
      %534 = vmatpush1.msra.mxu0 %v396
      %535 = vmatprep.subr.mxu0 0.0
      %536 = vmatpush1.msra.mxu0 %v395
      %537 = vmatprep.subr.mxu0 0.0
      %538 = vmatpush1.msra.mxu0 %v394
      %539 = vmatprep.subr.mxu0 0.0
      %540 = vmatpush1.msra.mxu0 %v393
      %541 = vmatprep.subr.mxu0 0.0
      %542 = vmatpush2.msra.mxu0 0.0
      %543 = vmatprep.subr.mxu0 0.0
      %544 = vmatpush2.msra.mxu0 0.0
      %545 = vmatprep.subr.mxu0 0.0
      %546 = vmatpush2.msra.mxu0 0.0
      %547 = vmatprep.subr.mxu0 0.0
      %548 = vmatpush2.msra.mxu0 0.0
      %549 = vmatprep.subr.mxu0 0.0
      %550 = vmatpush2.msra.mxu0 0.0
      %551 = vmatprep.subr.mxu0 0.0
      %552 = vmatpush2.msra.mxu0 0.0
      %553 = vmatprep.subr.mxu0 0.0
      %554 = vmatpush2.msra.mxu0 0.0
      %555 = vmatprep.subr.mxu0 0.0
      %556 = vmatpush2.msra.mxu0 0.0
      %557 = vmatprep.subr.mxu0 0.0
      %558 = vmatpush2.msra.mxu0 0.0
      %559 = vmatprep.subr.mxu0 0.0
      %560 = vmatpush2.msra.mxu0 0.0
      %561 = vmatprep.subr.mxu0 0.0
      %562 = vmatpush2.msra.mxu0 0.0
      %563 = vmatprep.subr.mxu0 0.0
      %564 = vmatpush2.msra.mxu0 0.0
      %565 = vmatprep.subr.mxu0 0.0
      %566 = vmatpush2.msra.mxu0 0.0
      %567 = vmatprep.subr.mxu0 0.0
      %568 = vmatpush2.msra.mxu0 0.0
      %569 = vmatprep.subr.mxu0 0.0
      %570 = vmatpush2.msra.mxu0 0.0
      %571 = vmatprep.subr.mxu0 0.0
      %572 = vmatpush2.msra.mxu0 0.0
      %573 = vmatprep.mubr.f32.mxu0 0.0
      %574 = vmatmul.mubr.f32.gmra.mxu0 %v390
      %v575 = vpop.f32.mrf.mxu0
      %v576 = vadd.f32 %v496, %v575
      %v577 = vpop.f32.mrf.mxu0
      %578 = vmatprep.mubr.f32.mxu0 0.0
      %579 = vmatmul.mubr.f32.gmra.mxu0 %v391
      %v580 = vpop.f32.mrf.mxu0
      %v581 = vadd.f32 %v501, %v580
      %v582 = vpop.f32.mrf.mxu0
      %583 = vmatprep.mubr.f32.mxu0 0.0
      %584 = vmatmul.mubr.f32.gmra.mxu0 %v392
      %v585 = vpop.f32.mrf.mxu0
      %v586 = vadd.f32 %v506, %v585
      %v587 = vpop.f32.mrf.mxu0
      %588 = vdwg.mxu0
      %v589 = vld [vmem:[%s385 + $0x2] sm:$0xff]
      %v590 = vld [vmem:[%s385 + $0xa] sm:$0xff]
      %v591 = vld [vmem:[%s385 + $0x12] sm:$0xff]
      %s592 = scalar_lea.vmem %s1, 256
      %v593 = vld [vmem:[%s592] sm:$0xff]
      %v594 = vld [vmem:[%s592 + $0x8] sm:$0xff]
      %v595 = vld [vmem:[%s592 + $0x10] sm:$0xff]
      %v596 = vld [vmem:[%s592 + $0x18] sm:$0xff]
      %v597 = vld [vmem:[%s592 + $0x20] sm:$0xff]
      %v598 = vld [vmem:[%s592 + $0x28] sm:$0xff]
      %v599 = vld [vmem:[%s592 + $0x30] sm:$0xff]
      %v600 = vld [vmem:[%s592 + $0x38] sm:$0xff]
      %v601 = vld [vmem:[%s592 + $0x40] sm:$0xff]
      %v602 = vld [vmem:[%s592 + $0x48] sm:$0xff]
      %v603 = vld [vmem:[%s592 + $0x50] sm:$0xff]
      %v604 = vld [vmem:[%s592 + $0x58] sm:$0xff]
      %v605 = vld [vmem:[%s592 + $0x60] sm:$0xff]
      %v606 = vld [vmem:[%s592 + $0x68] sm:$0xff]
      %v607 = vld [vmem:[%s592 + $0x70] sm:$0xff]
      %v608 = vld [vmem:[%s592 + $0x78] sm:$0xff]
      %609 = vmatprep.subr.mxu0 0.0
      %610 = vmatpush1.msra.mxu0 %v608
      %611 = vmatprep.subr.mxu0 0.0
      %612 = vmatpush1.msra.mxu0 %v607
      %613 = vmatprep.subr.mxu0 0.0
      %614 = vmatpush1.msra.mxu0 %v606
      %615 = vmatprep.subr.mxu0 0.0
      %616 = vmatpush1.msra.mxu0 %v605
      %617 = vmatprep.subr.mxu0 0.0
      %618 = vmatpush1.msra.mxu0 %v604
      %619 = vmatprep.subr.mxu0 0.0
      %620 = vmatpush1.msra.mxu0 %v603
      %621 = vmatprep.subr.mxu0 0.0
      %622 = vmatpush1.msra.mxu0 %v602
      %623 = vmatprep.subr.mxu0 0.0
      %624 = vmatpush1.msra.mxu0 %v601
      %625 = vmatprep.subr.mxu0 0.0
      %626 = vmatpush1.msra.mxu0 %v600
      %627 = vmatprep.subr.mxu0 0.0
      %628 = vmatpush1.msra.mxu0 %v599
      %629 = vmatprep.subr.mxu0 0.0
      %630 = vmatpush1.msra.mxu0 %v598
      %631 = vmatprep.subr.mxu0 0.0
      %632 = vmatpush1.msra.mxu0 %v597
      %633 = vmatprep.subr.mxu0 0.0
      %634 = vmatpush1.msra.mxu0 %v596
      %635 = vmatprep.subr.mxu0 0.0
      %636 = vmatpush1.msra.mxu0 %v595
      %637 = vmatprep.subr.mxu0 0.0
      %638 = vmatpush1.msra.mxu0 %v594
      %639 = vmatprep.subr.mxu0 0.0
      %640 = vmatpush1.msra.mxu0 %v593
      %641 = vmatprep.subr.mxu0 0.0
      %642 = vmatpush2.msra.mxu0 0.0
      %643 = vmatprep.subr.mxu0 0.0
      %644 = vmatpush2.msra.mxu0 0.0
      %645 = vmatprep.subr.mxu0 0.0
      %646 = vmatpush2.msra.mxu0 0.0
      %647 = vmatprep.subr.mxu0 0.0
      %648 = vmatpush2.msra.mxu0 0.0
      %649 = vmatprep.subr.mxu0 0.0
      %650 = vmatpush2.msra.mxu0 0.0
      %651 = vmatprep.subr.mxu0 0.0
      %652 = vmatpush2.msra.mxu0 0.0
      %653 = vmatprep.subr.mxu0 0.0
      %654 = vmatpush2.msra.mxu0 0.0
      %655 = vmatprep.subr.mxu0 0.0
      %656 = vmatpush2.msra.mxu0 0.0
      %657 = vmatprep.subr.mxu0 0.0
      %658 = vmatpush2.msra.mxu0 0.0
      %659 = vmatprep.subr.mxu0 0.0
      %660 = vmatpush2.msra.mxu0 0.0
      %661 = vmatprep.subr.mxu0 0.0
      %662 = vmatpush2.msra.mxu0 0.0
      %663 = vmatprep.subr.mxu0 0.0
      %664 = vmatpush2.msra.mxu0 0.0
      %665 = vmatprep.subr.mxu0 0.0
      %666 = vmatpush2.msra.mxu0 0.0
      %667 = vmatprep.subr.mxu0 0.0
      %668 = vmatpush2.msra.mxu0 0.0
      %669 = vmatprep.subr.mxu0 0.0
      %670 = vmatpush2.msra.mxu0 0.0
      %671 = vmatprep.subr.mxu0 0.0
      %672 = vmatpush2.msra.mxu0 0.0
      %673 = vmatprep.mubr.f32.mxu0 0.0
      %674 = vmatmul.mubr.f32.gmra.mxu0 %v589
      %v675 = vpop.f32.mrf.mxu0
      %v676 = vadd.f32 0.0, %v675
      %v677 = vpop.f32.mrf.mxu0
      %678 = vmatprep.mubr.f32.mxu0 0.0
      %679 = vmatmul.mubr.f32.gmra.mxu0 %v590
      %v680 = vpop.f32.mrf.mxu0
      %v681 = vadd.f32 0.0, %v680
      %v682 = vpop.f32.mrf.mxu0
      %683 = vmatprep.mubr.f32.mxu0 0.0
      %684 = vmatmul.mubr.f32.gmra.mxu0 %v591
      %v685 = vpop.f32.mrf.mxu0
      %v686 = vadd.f32 0.0, %v685
      %v687 = vpop.f32.mrf.mxu0
      %688 = vdwg.mxu0
      %v689 = vadd.f32 %v576, %v676
      %v690 = vadd.f32 %v581, %v681
      %v691 = vadd.f32 %v586, %v686
      %v692 = vld [vmem:[%s2] sm:$0x1]
      %v694 = vlaneseq
      %v695 = vshrl.u32 %v694, 7
      %v696 = vsub.s32 0, %v695
      %v697 = vrot.slane %v692, %v696
      %v699 = vadd.f32 %v689, %v697
      %v700 = vadd.f32 %v690, %v697
      %v701 = vadd.f32 %v691, %v697
      %v702 = vmax.f32 %v699, 0.0
      %v703 = vmax.f32 %v700, 0.0
      %v704 = vmax.f32 %v701, 0.0
      %705 = vst [vmem:[#allocation3] sm:$0xff] %v702
      %706 = vst [vmem:[#allocation3 + $0x8] sm:$0xff] %v703
      %707 = vst [vmem:[#allocation3 + $0x10] sm:$0xff] %v704
      %s708 = smul.u32 %s23, 16
      %s709 = ssub.s32 %s708, 1
      %p710 = scmp.lt.s32.totalorder %s709, 0
      %s711 = sadd.s32 %s708, 23
      %p712 = scmp.gt.s32.totalorder %s711, 48
      %p713 = por %p710, %p712
      // Predicated region
      $region121: #{positionwise_ffn.1} parent=43 // pred_check
        %p714 = pneg %p713
      $region122: #{positionwise_ffn.1} parent=43 // pred_check_branch
        %716 = sbr.rel (%p714) target = $region124
      $region123: #{positionwise_ffn.1} parent=43 // pred_region
        %v717 = vlaneseq
        %v718 = vshrl.u32 %v717, 7
        %v719 = vadd.s32 %v718, 8
        %v720 = vadd.s32 %v718, 16
        %v721 = vstv %s709
        %v722 = vadd.s32 %v718, %v721
        %v723 = vadd.s32 %v719, %v721
        %v724 = vadd.s32 %v720, %v721
        %vm725 = vcmp.ge.s32.totalorder %v722, 0
        %vm726 = vcmp.ge.s32.totalorder %v723, 0
        %vm727 = vcmp.ge.s32.totalorder %v724, 0
        %vm728 = vcmp.lt.s32.totalorder %v722, 48
        %vm729 = vcmp.lt.s32.totalorder %v723, 48
        %vm730 = vcmp.lt.s32.totalorder %v724, 48
        %vm731 = vmand %vm725, %vm728
        %vm732 = vmand %vm726, %vm729
        %vm733 = vmand %vm727, %vm730
        %v734 = vld [vmem:[#allocation3] sm:$0xff]
        %v735 = vld [vmem:[#allocation3 + $0x8] sm:$0xff]
        %v736 = vld [vmem:[#allocation3 + $0x10] sm:$0xff]
        %v737 = vsel %vm731, 1, 0
        %v738 = vsel %vm732, 1, 0
        %v739 = vsel %vm733, 1, 0
        %vm740 = vcmp.eq.s32.totalorder %v737, 1
        %vm741 = vcmp.eq.s32.totalorder %v738, 1
        %vm742 = vcmp.eq.s32.totalorder %v739, 1
        %v743 = vsel %vm740, %v734, 0.0
        %v744 = vsel %vm741, %v735, 0.0
        %v745 = vsel %vm742, %v736, 0.0
        %746 = vst [vmem:[#allocation3] sm:$0xff] %v743
        %747 = vst [vmem:[#allocation3 + $0x8] sm:$0xff] %v744
        %748 = vst [vmem:[#allocation3 + $0x10] sm:$0xff] %v745
      $region124: #{positionwise_ffn.1} parent=43 // pred_fallthru
        _
      %v749 = vld [vmem:[#allocation3] sm:$0xff]
      %v750 = vld [vmem:[#allocation3 + $0x8] sm:$0xff]
      %v751 = vld [vmem:[%s3] sm:$0xff]
      %v752 = vld [vmem:[%s3 + $0x8] sm:$0xff]
      %v753 = vld [vmem:[%s3 + $0x10] sm:$0xff]
      %v754 = vld [vmem:[%s3 + $0x18] sm:$0xff]
      %v755 = vld [vmem:[%s3 + $0x20] sm:$0xff]
      %v756 = vld [vmem:[%s3 + $0x28] sm:$0xff]
      %v757 = vld [vmem:[%s3 + $0x30] sm:$0xff]
      %v758 = vld [vmem:[%s3 + $0x38] sm:$0xff]
      %v759 = vld [vmem:[%s3 + $0x40] sm:$0xff]
      %v760 = vld [vmem:[%s3 + $0x48] sm:$0xff]
      %v761 = vld [vmem:[%s3 + $0x50] sm:$0xff]
      %v762 = vld [vmem:[%s3 + $0x58] sm:$0xff]
      %v763 = vld [vmem:[%s3 + $0x60] sm:$0xff]
      %v764 = vld [vmem:[%s3 + $0x68] sm:$0xff]
      %v765 = vld [vmem:[%s3 + $0x70] sm:$0xff]
      %v766 = vld [vmem:[%s3 + $0x78] sm:$0xff]
      %v767 = vld [vmem:[#allocation3 + $0x1] sm:$0xff]
      %v768 = vld [vmem:[#allocation3 + $0x9] sm:$0xff]
      %s769 = scalar_lea.vmem %s3, 128
      %v770 = vld [vmem:[%s769] sm:$0xff]
      %v771 = vld [vmem:[%s769 + $0x8] sm:$0xff]
      %v772 = vld [vmem:[%s769 + $0x10] sm:$0xff]
      %v773 = vld [vmem:[%s769 + $0x18] sm:$0xff]
      %v774 = vld [vmem:[%s769 + $0x20] sm:$0xff]
      %v775 = vld [vmem:[%s769 + $0x28] sm:$0xff]
      %v776 = vld [vmem:[%s769 + $0x30] sm:$0xff]
      %v777 = vld [vmem:[%s769 + $0x38] sm:$0xff]
      %v778 = vld [vmem:[%s769 + $0x40] sm:$0xff]
      %v779 = vld [vmem:[%s769 + $0x48] sm:$0xff]
      %v780 = vld [vmem:[%s769 + $0x50] sm:$0xff]
      %v781 = vld [vmem:[%s769 + $0x58] sm:$0xff]
      %v782 = vld [vmem:[%s769 + $0x60] sm:$0xff]
      %v783 = vld [vmem:[%s769 + $0x68] sm:$0xff]
      %v784 = vld [vmem:[%s769 + $0x70] sm:$0xff]
      %v785 = vld [vmem:[%s769 + $0x78] sm:$0xff]
      %786 = vmatprep.subr.mxu0 0.0
      %787 = vmatpush1.msra.mxu0 %v785
      %788 = vmatprep.subr.mxu0 0.0
      %789 = vmatpush1.msra.mxu0 %v784
      %790 = vmatprep.subr.mxu0 0.0
      %791 = vmatpush1.msra.mxu0 %v783
      %792 = vmatprep.subr.mxu0 0.0
      %793 = vmatpush1.msra.mxu0 %v782
      %794 = vmatprep.subr.mxu0 0.0
      %795 = vmatpush1.msra.mxu0 %v781
      %796 = vmatprep.subr.mxu0 0.0
      %797 = vmatpush1.msra.mxu0 %v780
      %798 = vmatprep.subr.mxu0 0.0
      %799 = vmatpush1.msra.mxu0 %v779
      %800 = vmatprep.subr.mxu0 0.0
      %801 = vmatpush1.msra.mxu0 %v778
      %802 = vmatprep.subr.mxu0 0.0
      %803 = vmatpush1.msra.mxu0 %v777
      %804 = vmatprep.subr.mxu0 0.0
      %805 = vmatpush1.msra.mxu0 %v776
      %806 = vmatprep.subr.mxu0 0.0
      %807 = vmatpush1.msra.mxu0 %v775
      %808 = vmatprep.subr.mxu0 0.0
      %809 = vmatpush1.msra.mxu0 %v774
      %810 = vmatprep.subr.mxu0 0.0
      %811 = vmatpush1.msra.mxu0 %v773
      %812 = vmatprep.subr.mxu0 0.0
      %813 = vmatpush1.msra.mxu0 %v772
      %814 = vmatprep.subr.mxu0 0.0
      %815 = vmatpush1.msra.mxu0 %v771
      %816 = vmatprep.subr.mxu0 0.0
      %817 = vmatpush1.msra.mxu0 %v770
      %818 = vmatprep.subr.mxu0 0.0
      %819 = vmatpush2.msra.mxu0 0.0
      %820 = vmatprep.subr.mxu0 0.0
      %821 = vmatpush2.msra.mxu0 0.0
      %822 = vmatprep.subr.mxu0 0.0
      %823 = vmatpush2.msra.mxu0 0.0
      %824 = vmatprep.subr.mxu0 0.0
      %825 = vmatpush2.msra.mxu0 0.0
      %826 = vmatprep.subr.mxu0 0.0
      %827 = vmatpush2.msra.mxu0 0.0
      %828 = vmatprep.subr.mxu0 0.0
      %829 = vmatpush2.msra.mxu0 0.0
      %830 = vmatprep.subr.mxu0 0.0
      %831 = vmatpush2.msra.mxu0 0.0
      %832 = vmatprep.subr.mxu0 0.0
      %833 = vmatpush2.msra.mxu0 0.0
      %834 = vmatprep.subr.mxu0 0.0
      %835 = vmatpush2.msra.mxu0 0.0
      %836 = vmatprep.subr.mxu0 0.0
      %837 = vmatpush2.msra.mxu0 0.0
      %838 = vmatprep.subr.mxu0 0.0
      %839 = vmatpush2.msra.mxu0 0.0
      %840 = vmatprep.subr.mxu0 0.0
      %841 = vmatpush2.msra.mxu0 0.0
      %842 = vmatprep.subr.mxu0 0.0
      %843 = vmatpush2.msra.mxu0 0.0
      %844 = vmatprep.subr.mxu0 0.0
      %845 = vmatpush2.msra.mxu0 0.0
      %846 = vmatprep.subr.mxu0 0.0
      %847 = vmatpush2.msra.mxu0 0.0
      %848 = vmatprep.subr.mxu0 0.0
      %849 = vmatpush2.msra.mxu0 0.0
      %850 = vmatprep.mubr.f32.mxu0 0.0
      %851 = vmatmul.mubr.f32.gmra.mxu0 %v767
      %v852 = vpop.f32.mrf.mxu0
      %v853 = vadd.f32 0.0, %v852
      %v854 = vpop.f32.mrf.mxu0
      %855 = vmatprep.mubr.f32.mxu0 0.0
      %856 = vmatmul.mubr.f32.gmra.mxu0 %v768
      %v857 = vpop.f32.mrf.mxu0
      %v858 = vadd.f32 0.0, %v857
      %v859 = vpop.f32.mrf.mxu0
      %860 = vdwg.mxu0
      %861 = vmatprep.subr.mxu0 0.0
      %862 = vmatpush1.msra.mxu0 %v766
      %863 = vmatprep.subr.mxu0 0.0
      %864 = vmatpush1.msra.mxu0 %v765
      %865 = vmatprep.subr.mxu0 0.0
      %866 = vmatpush1.msra.mxu0 %v764
      %867 = vmatprep.subr.mxu0 0.0
      %868 = vmatpush1.msra.mxu0 %v763
      %869 = vmatprep.subr.mxu0 0.0
      %870 = vmatpush1.msra.mxu0 %v762
      %871 = vmatprep.subr.mxu0 0.0
      %872 = vmatpush1.msra.mxu0 %v761
      %873 = vmatprep.subr.mxu0 0.0
      %874 = vmatpush1.msra.mxu0 %v760
      %875 = vmatprep.subr.mxu0 0.0
      %876 = vmatpush1.msra.mxu0 %v759
      %877 = vmatprep.subr.mxu0 0.0
      %878 = vmatpush1.msra.mxu0 %v758
      %879 = vmatprep.subr.mxu0 0.0
      %880 = vmatpush1.msra.mxu0 %v757
      %881 = vmatprep.subr.mxu0 0.0
      %882 = vmatpush1.msra.mxu0 %v756
      %883 = vmatprep.subr.mxu0 0.0
      %884 = vmatpush1.msra.mxu0 %v755
      %885 = vmatprep.subr.mxu0 0.0
      %886 = vmatpush1.msra.mxu0 %v754
      %887 = vmatprep.subr.mxu0 0.0
      %888 = vmatpush1.msra.mxu0 %v753
      %889 = vmatprep.subr.mxu0 0.0
      %890 = vmatpush1.msra.mxu0 %v752
      %891 = vmatprep.subr.mxu0 0.0
      %892 = vmatpush1.msra.mxu0 %v751
      %893 = vmatprep.subr.mxu0 0.0
      %894 = vmatpush2.msra.mxu0 0.0
      %895 = vmatprep.subr.mxu0 0.0
      %896 = vmatpush2.msra.mxu0 0.0
      %897 = vmatprep.subr.mxu0 0.0
      %898 = vmatpush2.msra.mxu0 0.0
      %899 = vmatprep.subr.mxu0 0.0
      %900 = vmatpush2.msra.mxu0 0.0
      %901 = vmatprep.subr.mxu0 0.0
      %902 = vmatpush2.msra.mxu0 0.0
      %903 = vmatprep.subr.mxu0 0.0
      %904 = vmatpush2.msra.mxu0 0.0
      %905 = vmatprep.subr.mxu0 0.0
      %906 = vmatpush2.msra.mxu0 0.0
      %907 = vmatprep.subr.mxu0 0.0
      %908 = vmatpush2.msra.mxu0 0.0
      %909 = vmatprep.subr.mxu0 0.0
      %910 = vmatpush2.msra.mxu0 0.0
      %911 = vmatprep.subr.mxu0 0.0
      %912 = vmatpush2.msra.mxu0 0.0
      %913 = vmatprep.subr.mxu0 0.0
      %914 = vmatpush2.msra.mxu0 0.0
      %915 = vmatprep.subr.mxu0 0.0
      %916 = vmatpush2.msra.mxu0 0.0
      %917 = vmatprep.subr.mxu0 0.0
      %918 = vmatpush2.msra.mxu0 0.0
      %919 = vmatprep.subr.mxu0 0.0
      %920 = vmatpush2.msra.mxu0 0.0
      %921 = vmatprep.subr.mxu0 0.0
      %922 = vmatpush2.msra.mxu0 0.0
      %923 = vmatprep.subr.mxu0 0.0
      %924 = vmatpush2.msra.mxu0 0.0
      %925 = vmatprep.mubr.f32.mxu0 0.0
      %926 = vmatmul.mubr.f32.gmra.mxu0 %v749
      %v927 = vpop.f32.mrf.mxu0
      %v928 = vadd.f32 %v853, %v927
      %v929 = vpop.f32.mrf.mxu0
      %930 = vmatprep.mubr.f32.mxu0 0.0
      %931 = vmatmul.mubr.f32.gmra.mxu0 %v750
      %v932 = vpop.f32.mrf.mxu0
      %v933 = vadd.f32 %v858, %v932
      %v934 = vpop.f32.mrf.mxu0
      %935 = vdwg.mxu0
      %v936 = vld [vmem:[#allocation3 + $0x2] sm:$0xff]
      %v937 = vld [vmem:[#allocation3 + $0xa] sm:$0xff]
      %s938 = scalar_lea.vmem %s3, 256
      %v939 = vld [vmem:[%s938] sm:$0xff]
      %v940 = vld [vmem:[%s938 + $0x8] sm:$0xff]
      %v941 = vld [vmem:[%s938 + $0x10] sm:$0xff]
      %v942 = vld [vmem:[%s938 + $0x18] sm:$0xff]
      %v943 = vld [vmem:[%s938 + $0x20] sm:$0xff]
      %v944 = vld [vmem:[%s938 + $0x28] sm:$0xff]
      %v945 = vld [vmem:[%s938 + $0x30] sm:$0xff]
      %v946 = vld [vmem:[%s938 + $0x38] sm:$0xff]
      %v947 = vld [vmem:[%s938 + $0x40] sm:$0xff]
      %v948 = vld [vmem:[%s938 + $0x48] sm:$0xff]
      %v949 = vld [vmem:[%s938 + $0x50] sm:$0xff]
      %v950 = vld [vmem:[%s938 + $0x58] sm:$0xff]
      %v951 = vld [vmem:[%s938 + $0x60] sm:$0xff]
      %v952 = vld [vmem:[%s938 + $0x68] sm:$0xff]
      %v953 = vld [vmem:[%s938 + $0x70] sm:$0xff]
      %v954 = vld [vmem:[%s938 + $0x78] sm:$0xff]
      %955 = vmatprep.subr.mxu0 0.0
      %956 = vmatpush1.msra.mxu0 %v954
      %957 = vmatprep.subr.mxu0 0.0
      %958 = vmatpush1.msra.mxu0 %v953
      %959 = vmatprep.subr.mxu0 0.0
      %960 = vmatpush1.msra.mxu0 %v952
      %961 = vmatprep.subr.mxu0 0.0
      %962 = vmatpush1.msra.mxu0 %v951
      %963 = vmatprep.subr.mxu0 0.0
      %964 = vmatpush1.msra.mxu0 %v950
      %965 = vmatprep.subr.mxu0 0.0
      %966 = vmatpush1.msra.mxu0 %v949
      %967 = vmatprep.subr.mxu0 0.0
      %968 = vmatpush1.msra.mxu0 %v948
      %969 = vmatprep.subr.mxu0 0.0
      %970 = vmatpush1.msra.mxu0 %v947
      %971 = vmatprep.subr.mxu0 0.0
      %972 = vmatpush1.msra.mxu0 %v946
      %973 = vmatprep.subr.mxu0 0.0
      %974 = vmatpush1.msra.mxu0 %v945
      %975 = vmatprep.subr.mxu0 0.0
      %976 = vmatpush1.msra.mxu0 %v944
      %977 = vmatprep.subr.mxu0 0.0
      %978 = vmatpush1.msra.mxu0 %v943
      %979 = vmatprep.subr.mxu0 0.0
      %980 = vmatpush1.msra.mxu0 %v942
      %981 = vmatprep.subr.mxu0 0.0
      %982 = vmatpush1.msra.mxu0 %v941
      %983 = vmatprep.subr.mxu0 0.0
      %984 = vmatpush1.msra.mxu0 %v940
      %985 = vmatprep.subr.mxu0 0.0
      %986 = vmatpush1.msra.mxu0 %v939
      %987 = vmatprep.subr.mxu0 0.0
      %988 = vmatpush2.msra.mxu0 0.0
      %989 = vmatprep.subr.mxu0 0.0
      %990 = vmatpush2.msra.mxu0 0.0
      %991 = vmatprep.subr.mxu0 0.0
      %992 = vmatpush2.msra.mxu0 0.0
      %993 = vmatprep.subr.mxu0 0.0
      %994 = vmatpush2.msra.mxu0 0.0
      %995 = vmatprep.subr.mxu0 0.0
      %996 = vmatpush2.msra.mxu0 0.0
      %997 = vmatprep.subr.mxu0 0.0
      %998 = vmatpush2.msra.mxu0 0.0
      %999 = vmatprep.subr.mxu0 0.0
      %1000 = vmatpush2.msra.mxu0 0.0
      %1001 = vmatprep.subr.mxu0 0.0
      %1002 = vmatpush2.msra.mxu0 0.0
      %1003 = vmatprep.subr.mxu0 0.0
      %1004 = vmatpush2.msra.mxu0 0.0
      %1005 = vmatprep.subr.mxu0 0.0
      %1006 = vmatpush2.msra.mxu0 0.0
      %1007 = vmatprep.subr.mxu0 0.0
      %1008 = vmatpush2.msra.mxu0 0.0
      %1009 = vmatprep.subr.mxu0 0.0
      %1010 = vmatpush2.msra.mxu0 0.0
      %1011 = vmatprep.subr.mxu0 0.0
      %1012 = vmatpush2.msra.mxu0 0.0
      %1013 = vmatprep.subr.mxu0 0.0
      %1014 = vmatpush2.msra.mxu0 0.0
      %1015 = vmatprep.subr.mxu0 0.0
      %1016 = vmatpush2.msra.mxu0 0.0
      %1017 = vmatprep.subr.mxu0 0.0
      %1018 = vmatpush2.msra.mxu0 0.0
      %1019 = vmatprep.mubr.f32.mxu0 0.0
      %1020 = vmatmul.mubr.f32.gmra.mxu0 %v936
      %v1021 = vpop.f32.mrf.mxu0
      %v1022 = vadd.f32 0.0, %v1021
      %v1023 = vpop.f32.mrf.mxu0
      %1024 = vmatprep.mubr.f32.mxu0 0.0
      %1025 = vmatmul.mubr.f32.gmra.mxu0 %v937
      %v1026 = vpop.f32.mrf.mxu0
      %v1027 = vadd.f32 0.0, %v1026
      %v1028 = vpop.f32.mrf.mxu0
      %1029 = vdwg.mxu0
      %v1030 = vadd.f32 %v928, %v1022
      %v1031 = vadd.f32 %v933, %v1027
      %v1032 = vld [vmem:[%s4] sm:$0x1]
      %v1034 = vlaneseq
      %v1035 = vshrl.u32 %v1034, 7
      %v1036 = vsub.s32 0, %v1035
      %v1037 = vrot.slane %v1032, %v1036
      %v1039 = vadd.f32 %v1030, %v1037
      %v1040 = vadd.f32 %v1031, %v1037
      %v1041 = vld [vmem:[%s385 + $0x2] sm:$0xff]
      %v1042 = vld [vmem:[%s385 + $0xa] sm:$0xff]
      %v1043 = vadd.f32 %v1039, %v1041
      %v1044 = vadd.f32 %v1040, %v1042
      %1045 = vadd.xlane.f32.xlu0 %v1043
      %v1046 = vpop.xlane.xlu0 %1045
      %1047 = vadd.xlane.f32.xlu0 %v1044
      %v1048 = vpop.xlane.xlu0 %1047
      %v1049 = vmul.f32 %v1046, 0.03125
      %v1050 = vmul.f32 %v1048, 0.03125
      %v1051 = vsub.f32 %v1043, %v1049
      %v1052 = vsub.f32 %v1044, %v1050
      %v1053 = vlaneseq
      %v1054 = vand.u32 %v1053, 127
      %vm1055 = vcmp.lt.s32.totalorder %v1054, 32
      %v1056 = vsel %vm1055, 1, 0
      %vm1057 = vcmp.eq.s32.totalorder %v1056, 1
      %v1058 = vsel %vm1057, %v1051, 0.0
      %v1059 = vsel %vm1057, %v1052, 0.0
      %v1060 = vmul.f32 %v1058, %v1058
      %v1061 = vmul.f32 %v1059, %v1059
      %1062 = vadd.xlane.f32.xlu0 %v1060
      %v1063 = vpop.xlane.xlu0 %1062
      %1064 = vadd.xlane.f32.xlu0 %v1061
      %v1065 = vpop.xlane.xlu0 %1064
      %v1066 = vmul.f32 %v1063, 0.03125
      %v1067 = vmul.f32 %v1065, 0.03125
      %v1068 = vadd.f32 %v1066, 1e-05
      %v1069 = vadd.f32 %v1067, 1e-05
      %v1070 = vrsqrt.pop %v1068
      %v1071 = vrsqrt.pop %v1069
      %v1072 = vmul.f32 %v1058, %v1070
      %v1073 = vmul.f32 %v1059, %v1071
      %v1074 = vld [vmem:[%s5] sm:$0x1]
      %v1076 = vlaneseq
      %v1077 = vshrl.u32 %v1076, 7
      %v1078 = vsub.s32 0, %v1077
      %v1079 = vrot.slane %v1074, %v1078
      %v1081 = vmul.f32 %v1072, %v1079
      %v1082 = vmul.f32 %v1073, %v1079
      %v1083 = vld [vmem:[%s6] sm:$0x1]
      %v1085 = vlaneseq
      %v1086 = vshrl.u32 %v1085, 7
      %v1087 = vsub.s32 0, %v1086
      %v1088 = vrot.slane %v1083, %v1087
      %v1090 = vadd.f32 %v1081, %v1088
      %v1091 = vadd.f32 %v1082, %v1088
      %1092 = vst [vmem:[%s254] sm:$0xff] %v1090
      %1093 = vst [vmem:[%s254 + $0x8] sm:$0xff] %v1091
      %s1094 = smul.u32 2, %s23
      %p1095 = scmp.lt.s32.totalorder %s22, 1
      %s1096 = scalar_select %p1095, %s22, 1
      %p1097 = scmp.lt.s32.totalorder %s1094, 5
      %s1098 = scalar_select %p1097, %s1094, 5
      %s1099 = smul.addr %s1096, 6
      %s1100 = sadd.s32 %s1098, %s1099
      %s1101 = smul.addr %s1100, 8
      %s1102 = scalar_lea.vmem %s7, %s1101
      // Predicated region
      $region125: #{positionwise_ffn.1} parent=43 // pred_check
        %p1103 = pneg %p176
      $region126: #{positionwise_ffn.1} parent=43 // pred_check_branch
        %1105 = sbr.rel (%p1103) target = $region128
      $region127: #{positionwise_ffn.1} parent=43 // pred_region
        %s1106 = smul.u32 2, %s23
      $region128: #{positionwise_ffn.1} parent=43 // pred_fallthru
        _
    $region44: #{positionwise_ffn.1} parent=5 // pred_fallthru
      _
    %p1107 = scmp.le.s32.totalorder 2, %s13
    // Predicated region
    $region129: #{positionwise_ffn.1} parent=5 // pred_check
      %p1108 = pneg %p1107
    $region130: #{positionwise_ffn.1} parent=5 // pred_check_branch
      %1110 = sbr.rel (%p1108) target = $region132
    $region131: #{positionwise_ffn.1} parent=5 // pred_region
      %s1111 = ssub.s32 %s13, 2
      // Predicated region
      $region133: #{positionwise_ffn.1} parent=131 // pred_check
        %p1112 = pneg %p182
      $region134: #{positionwise_ffn.1} parent=131 // pred_check_branch
        %1114 = sbr.rel (%p1112) target = $region136
      $region135: #{positionwise_ffn.1} parent=131 // pred_region
        %s1115 = smul.u32 2, %s25
        %p1116 = scmp.lt.s32.totalorder %s24, 1
        %s1117 = scalar_select %p1116, %s24, 1
        %p1118 = scmp.lt.s32.totalorder %s1115, 5
        %s1119 = scalar_select %p1118, %s1115, 5
        %s1120 = smul.addr %s1117, 6
        %s1121 = sadd.s32 %s1119, %s1120
        %s1122 = smul.addr %s1121, 8
        %s1123 = scalar_lea.vmem %s7, %s1122
      $region136: #{positionwise_ffn.1} parent=131 // pred_fallthru
        _
    $region132: #{positionwise_ffn.1} parent=5 // pred_fallthru
      _
  $region6: #{positionwise_ffn.1} parent=0 // loop_footer
    %s17 = sadd.s32 1, %s13
  $region7: #{positionwise_ffn.1} parent=0 // loop_footer_branch
    %12 = sbr.rel target = $region3
  $region8: #{positionwise_ffn.1} parent=0 // loop_exit
    _
  %1124 = vsyncmov [#allocation4]
  %s1125 = vpop.sfrf %1124
  %p1126 = scmp.eq.s32.totalorder %s1125, 0
  %p1127 = pneg %p1126
  %1129 = shalt.err (%p1127)
  %s1130 = scalar_lea.sflag [#allocation4], 1
  %1131 = vsyncmov %s1130
  %s1132 = vpop.sfrf %1131
  %p1133 = scmp.eq.s32.totalorder %s1132, 0
  %p1134 = pneg %p1133
  %1136 = shalt.err (%p1134)

</llo_original>
